<compile_context>
chip_gen: v7x
topology: tpu7x:2x2x1
jax: 0.10.0
libtpu: 0.0.40
codegen_flags: <defaults>
</compile_context>

<pallas_src>
import functools
import math

import jax
import jax.numpy as jnp
from jax.experimental import pallas as pl
from jax.experimental.pallas import tpu as pltpu

N_LAYERS = 3
INPUT_DIM = 64
HIDDEN_DIM = 128
LABEL_DIM = 527
LABEL_PAD = 640          # 5 * 128 lanes
LN_EPS = 1e-5


def _layernorm(h, gamma, beta):
    # Fused single-pass LN: var = E[h^2] - mu^2 (one combined reduction pass).
    mu = jnp.mean(h, axis=-1, keepdims=True)
    ms = jnp.mean(h * h, axis=-1, keepdims=True)
    var = ms - mu * mu
    return (h - mu) * jax.lax.rsqrt(var + LN_EPS) * gamma + beta


def _linear_model_kernel(T_real, T_pad, tile_b, x_ref, w0_ref, b0_ref, *refs):
    # refs layout: (ln_g_i, ln_b_i, w_i, b_i) * N_LAYERS, w_heads, b_heads, out_ref
    out_ref = refs[-1]
    blocks = refs[:4 * N_LAYERS]
    w_heads_ref, b_heads_ref = refs[4 * N_LAYERS], refs[4 * N_LAYERS + 1]

    # x block is (1, tile_b*T_pad, D_in) f32; drop the leading grid axis.
    h = x_ref[0]                                                     # (M, D_in)

    # NOTE: dropout (p=0.1) is identity at inference; no RNG needed.
    # bf16 MXU datapath, f32 accumulation.
    h = jnp.dot(h.astype(jnp.bfloat16), w0_ref[...],
                preferred_element_type=jnp.float32) + b0_ref[...]
    for i in range(N_LAYERS):
        g, be, w, b = blocks[4 * i:4 * i + 4]
        h = _layernorm(h, g[...], be[...])
        h = jnp.dot(h.astype(jnp.bfloat16), w[...],
                    preferred_element_type=jnp.float32) + b[...]

    # Fused head: two dots against static (640 = 5*128 lane-aligned) slices of
    # the single resident w_heads array -> lp/la emitted directly, no (M, 1280)
    # logits buffer is ever materialized.
    hb = h.astype(jnp.bfloat16)
    lp = jnp.dot(hb, w_heads_ref[:, :LABEL_PAD],
                 preferred_element_type=jnp.float32) + b_heads_ref[:, :LABEL_PAD]
    la = jnp.dot(hb, w_heads_ref[:, LABEL_PAD:],
                 preferred_element_type=jnp.float32) + b_heads_ref[:, LABEL_PAD:]
    lp = lp.reshape(tile_b, T_pad, LABEL_PAD)
    la = la.reshape(tile_b, T_pad, LABEL_PAD)

    # frame_prob = clamp(sigmoid(fc_prob(h)))
    # TODO(synk): on v6e/v7x the sigmoid/exp could run in bf16 (EUP bf16 ~2x);
    #             kept f32 so the same kernel stays optimal-safe on v5e.
    fp = jnp.clip(jax.nn.sigmoid(lp), 1e-7, 1.0 - 1e-7)

    # Softmax over the frame axis fused with attention pooling:
    #   global = sum_t(fp * e) * reciprocal(sum_t e); frame_att never stored.
    m = jnp.max(la, axis=1, keepdims=True)
    e = jnp.exp(la - m)
    if T_pad != T_real:  # compile-time branch; only emitted when T % 8 != 0
        t_idx = jax.lax.broadcasted_iota(jnp.int32, (1, T_pad, 1), 1)
        e = jnp.where(t_idx < T_real, e, 0.0)
    s = jnp.sum(e, axis=1)                                           # (tile_b, L_PAD)
    num = jnp.sum(fp * e, axis=1)                                    # (tile_b, L_PAD)
    out_ref[0] = num * pl.reciprocal(s, approx=True)                 # EUP vrcp


def _choose_tile_b(B, T_pad, target_rows=512):
    """tile_b so tile_m = tile_b*T_pad ~ target_rows (fits v7x's 64 MiB VMEM),
    with at least 2 grid steps whenever B >= 2 (both v7x TensorCores busy)."""
    tile_b = max(1, target_rows // T_pad)
    if B >= 2:
        tile_b = min(tile_b, pl.cdiv(B, 2))
    return max(1, min(tile_b, B))


def init_params(key):
    """Deterministic synthetic parameters (shapes from LinearModel.__init__)."""
    ks = iter(jax.random.split(key, 64))
    p = {}
    scale = 0.05
    p["w0"] = scale * jax.random.normal(next(ks), (INPUT_DIM, HIDDEN_DIM), jnp.float32)
    p["b0"] = scale * jax.random.normal(next(ks), (1, HIDDEN_DIM), jnp.float32)
    for i in range(N_LAYERS):
        p[f"ln{i}_g"] = jnp.ones((1, HIDDEN_DIM), jnp.float32)
        p[f"ln{i}_b"] = jnp.zeros((1, HIDDEN_DIM), jnp.float32)
        p[f"w{i+1}"] = scale * jax.random.normal(next(ks), (HIDDEN_DIM, HIDDEN_DIM), jnp.float32)
        p[f"b{i+1}"] = scale * jax.random.normal(next(ks), (1, HIDDEN_DIM), jnp.float32)
    p["wp"] = scale * jax.random.normal(next(ks), (HIDDEN_DIM, LABEL_DIM), jnp.float32)
    p["bp"] = scale * jax.random.normal(next(ks), (1, LABEL_DIM), jnp.float32)
    p["wa"] = scale * jax.random.normal(next(ks), (HIDDEN_DIM, LABEL_DIM), jnp.float32)
    p["ba"] = scale * jax.random.normal(next(ks), (1, LABEL_DIM), jnp.float32)
    return p


def pack_params(p):
    """Flatten params; pad the 527-wide heads to 640 lanes, fuse prob+att, and
    store all weight matrices in bf16 (MXU path). Biases / LN params stay f32."""
    pad = LABEL_PAD - LABEL_DIM
    wp = jnp.pad(p["wp"], ((0, 0), (0, pad)))
    wa = jnp.pad(p["wa"], ((0, 0), (0, pad)))
    bp = jnp.pad(p["bp"], ((0, 0), (0, pad)))
    ba = jnp.pad(p["ba"], ((0, 0), (0, pad)))
    w_heads = jnp.concatenate([wp, wa], axis=1).astype(jnp.bfloat16)   # (128, 1280)
    b_heads = jnp.concatenate([bp, ba], axis=1)                        # (1,   1280) f32

    flat = [p["w0"].astype(jnp.bfloat16), p["b0"]]
    for i in range(N_LAYERS):
        flat += [p[f"ln{i}_g"], p[f"ln{i}_b"],
                 p[f"w{i+1}"].astype(jnp.bfloat16), p[f"b{i+1}"]]
    flat += [w_heads, b_heads]
    return flat


@jax.jit
def linear_model_forward(x, *flat_params):
    B, T, d_in = x.shape

    # Keep T sublane-aligned; padded frames are masked out in the epilogue.
    T_pad = ((T + 7) // 8) * 8
    if T_pad != T:
        x = jnp.pad(x, ((0, 0), (0, T_pad - T), (0, 0)))

    tile_b = _choose_tile_b(B, T_pad)
    nb = pl.cdiv(B, tile_b)
    B_pad = nb * tile_b
    if B_pad != B:
        # Wrapper-side batch padding: blocks stay bounded, no whole-batch block.
        x = jnp.pad(x, ((0, B_pad - B), (0, 0), (0, 0)))

    tile_m = tile_b * T_pad
    x3 = x.reshape(nb, tile_m, d_in)

    const2d = lambda i: (0, 0)
    in_specs = [pl.BlockSpec((1, tile_m, d_in), lambda i: (i, 0, 0))]
    # Weights: full-shape blocks with constant index_map -> VMEM-resident
    # across all grid steps (DMA'd once).
    # TODO(synk): pipeline_mode=pl.Buffered(1) would halve the ~0.5 MB resident
    #             weight footprint; skipped to keep the compile conservative.
    in_specs += [pl.BlockSpec(p.shape, const2d) for p in flat_params]

    # VMEM budget derived from actual usage (v7x has only 64 MiB per core):
    # resident weights (double-buffer worst case) + 2x input/output blocks +
    # epilogue temporaries (~a few M x 640 f32 arrays) + slack.
    weight_bytes = sum(math.prod(p.shape) * p.dtype.itemsize for p in flat_params)
    vmem_limit = int(2 * weight_bytes
                     + 2 * tile_m * d_in * 4
                     + 2 * tile_b * LABEL_PAD * 4
                     + 10 * tile_m * LABEL_PAD * 4
                     + (8 << 20))
    vmem_limit = max(16 << 20, min(vmem_limit, 64 << 20))

    kernel = functools.partial(_linear_model_kernel, T, T_pad, tile_b)

    out = pl.pallas_call(
        kernel,
        out_shape=jax.ShapeDtypeStruct((nb, tile_b, LABEL_PAD), jnp.float32),
        grid=(nb,),
        in_specs=in_specs,
        out_specs=pl.BlockSpec((1, tile_b, LABEL_PAD), lambda i: (i, 0, 0)),
        compiler_params=pltpu.CompilerParams(
            dimension_semantics=("parallel",),
            vmem_limit_bytes=vmem_limit,
        ),
    )(x3, *flat_params)

    # Drop batch/lane padding and restore (B, label_dim).
    return out.reshape(B_pad, LABEL_PAD)[:B, :LABEL_DIM]


def reference_forward(x, p):
    B, T, _ = x.shape
    h = x.reshape(B * T, -1)
    h = h @ p["w0"] + p["b0"]
    for i in range(N_LAYERS):
        mu = h.mean(-1, keepdims=True)
        var = ((h - mu) ** 2).mean(-1, keepdims=True)
        h = (h - mu) / jnp.sqrt(var + LN_EPS) * p[f"ln{i}_g"] + p[f"ln{i}_b"]
        h = h @ p[f"w{i+1}"] + p[f"b{i+1}"]
    fp = jnp.clip(jax.nn.sigmoid(h @ p["wp"] + p["bp"]), 1e-7, 1 - 1e-7).reshape(B, T, -1)
    fa = jax.nn.softmax((h @ p["wa"] + p["ba"]).reshape(B, T, -1), axis=1)
    return (fp * fa).sum(axis=1)


if __name__ == "__main__":
    key = jax.random.PRNGKey(0)
    k_x, k_p = jax.random.split(key)
    B, T = 2, 8
    x = jax.random.normal(k_x, (B, T, INPUT_DIM), jnp.float32)
    params = init_params(k_p)
    flat = pack_params(params)

    out = linear_model_forward(x, *flat)
    out = jax.block_until_ready(out)

    ref = reference_forward(x, params)
    assert out.shape == (B, LABEL_DIM), out.shape
    # bf16 MXU datapath + approx reciprocal -> looser tolerance vs f32 reference.
    max_err = float(jnp.max(jnp.abs(out - ref)))
    assert max_err < 2e-2, max_err
    print("KERNEL_OK")
</pallas_src>

<mosaic_0001>
module attributes {stable_mosaic.version = 11 : i64} {
  func.func @_linear_model_kernel(%arg0: i32, %arg1: memref<1x8x64xf32, #tpu.memory_space<vmem>>, %arg2: memref<64x128xbf16, #tpu.memory_space<vmem>>, %arg3: memref<1x128xf32, #tpu.memory_space<vmem>>, %arg4: memref<1x128xf32, #tpu.memory_space<vmem>>, %arg5: memref<1x128xf32, #tpu.memory_space<vmem>>, %arg6: memref<128x128xbf16, #tpu.memory_space<vmem>>, %arg7: memref<1x128xf32, #tpu.memory_space<vmem>>, %arg8: memref<1x128xf32, #tpu.memory_space<vmem>>, %arg9: memref<1x128xf32, #tpu.memory_space<vmem>>, %arg10: memref<128x128xbf16, #tpu.memory_space<vmem>>, %arg11: memref<1x128xf32, #tpu.memory_space<vmem>>, %arg12: memref<1x128xf32, #tpu.memory_space<vmem>>, %arg13: memref<1x128xf32, #tpu.memory_space<vmem>>, %arg14: memref<128x128xbf16, #tpu.memory_space<vmem>>, %arg15: memref<1x128xf32, #tpu.memory_space<vmem>>, %arg16: memref<128x1280xbf16, #tpu.memory_space<vmem>>, %arg17: memref<1x1280xf32, #tpu.memory_space<vmem>>, %arg18: memref<1x1x640xf32, #tpu.memory_space<vmem>>) attributes {dimension_semantics = [#tpu.dimension_semantics<parallel>], iteration_bounds = array<i64: 2>, scalar_prefetch = 0 : i64, scratch_operands = 0 : i64, tpu.core_type = #tpu.core_type<tc>, window_params = [{transform_indices = @transform_0, window_bounds = array<i64: 1, 8, 64>}, {pipeline_mode = #tpu.pipeline_mode<synchronous>, transform_indices = @transform_1, window_bounds = array<i64: 64, 128>}, {pipeline_mode = #tpu.pipeline_mode<synchronous>, transform_indices = @transform_2, window_bounds = array<i64: 1, 128>}, {pipeline_mode = #tpu.pipeline_mode<synchronous>, transform_indices = @transform_3, window_bounds = array<i64: 1, 128>}, {pipeline_mode = #tpu.pipeline_mode<synchronous>, transform_indices = @transform_4, window_bounds = array<i64: 1, 128>}, {pipeline_mode = #tpu.pipeline_mode<synchronous>, transform_indices = @transform_5, window_bounds = array<i64: 128, 128>}, {pipeline_mode = #tpu.pipeline_mode<synchronous>, transform_indices = @transform_6, window_bounds = array<i64: 1, 128>}, {pipeline_mode = #tpu.pipeline_mode<synchronous>, transform_indices = @transform_7, window_bounds = array<i64: 1, 128>}, {pipeline_mode = #tpu.pipeline_mode<synchronous>, transform_indices = @transform_8, window_bounds = array<i64: 1, 128>}, {pipeline_mode = #tpu.pipeline_mode<synchronous>, transform_indices = @transform_9, window_bounds = array<i64: 128, 128>}, {pipeline_mode = #tpu.pipeline_mode<synchronous>, transform_indices = @transform_10, window_bounds = array<i64: 1, 128>}, {pipeline_mode = #tpu.pipeline_mode<synchronous>, transform_indices = @transform_11, window_bounds = array<i64: 1, 128>}, {pipeline_mode = #tpu.pipeline_mode<synchronous>, transform_indices = @transform_12, window_bounds = array<i64: 1, 128>}, {pipeline_mode = #tpu.pipeline_mode<synchronous>, transform_indices = @transform_13, window_bounds = array<i64: 128, 128>}, {pipeline_mode = #tpu.pipeline_mode<synchronous>, transform_indices = @transform_14, window_bounds = array<i64: 1, 128>}, {pipeline_mode = #tpu.pipeline_mode<synchronous>, transform_indices = @transform_15, window_bounds = array<i64: 128, 1280>}, {pipeline_mode = #tpu.pipeline_mode<synchronous>, transform_indices = @transform_16, window_bounds = array<i64: 1, 1280>}, {transform_indices = @transform_17, window_bounds = array<i64: 1, 1, 640>}]} {
    %c0 = arith.constant 0 : index
    %c0_0 = arith.constant 0 : index
    %c0_1 = arith.constant 0 : index
    %0 = vector.load %arg1[%c0, %c0_0, %c0_1] : memref<1x8x64xf32, #tpu.memory_space<vmem>>, vector<1x8x64xf32>
    %1 = vector.shape_cast %0 : vector<1x8x64xf32> to vector<8x64xf32>
    %2 = arith.truncf %1 : vector<8x64xf32> to vector<8x64xbf16>
    %c0_2 = arith.constant 0 : index
    %c0_3 = arith.constant 0 : index
    %3 = vector.load %arg2[%c0_2, %c0_3] : memref<64x128xbf16, #tpu.memory_space<vmem>>, vector<64x128xbf16>
    %cst = arith.constant dense<0.000000e+00> : vector<8x128xf32>
    %4 = tpu.matmul %2, %3, %cst {dimension_numbers = #tpu.dot_dimension_numbers<[1], [0], [0], [1], [0, 0, 1, 1], [], []>} : vector<8x64xbf16>, vector<64x128xbf16>, vector<8x128xf32> -> vector<8x128xf32>
    %c0_4 = arith.constant 0 : index
    %c0_5 = arith.constant 0 : index
    %5 = vector.load %arg3[%c0_4, %c0_5] : memref<1x128xf32, #tpu.memory_space<vmem>>, vector<1x128xf32>
    %6 = vector.broadcast %5 : vector<1x128xf32> to vector<8x128xf32>
    %7 = arith.addf %4, %6 : vector<8x128xf32>
    %c0_6 = arith.constant 0 : index
    %c0_7 = arith.constant 0 : index
    %8 = vector.load %arg4[%c0_6, %c0_7] : memref<1x128xf32, #tpu.memory_space<vmem>>, vector<1x128xf32>
    %c0_8 = arith.constant 0 : index
    %c0_9 = arith.constant 0 : index
    %9 = vector.load %arg5[%c0_8, %c0_9] : memref<1x128xf32, #tpu.memory_space<vmem>>, vector<1x128xf32>
    %cst_10 = arith.constant dense<0.000000e+00> : vector<8xf32>
    %10 = vector.multi_reduction <add>, %7, %cst_10 [1] : vector<8x128xf32> to vector<8xf32>
    %11 = vector.shape_cast %10 : vector<8xf32> to vector<8x1xf32>
    %cst_11 = arith.constant 1.280000e+02 : f32
    %12 = vector.broadcast %cst_11 : f32 to vector<8x1xf32>
    %13 = arith.divf %11, %12 : vector<8x1xf32>
    %14 = arith.mulf %7, %7 : vector<8x128xf32>
    %cst_12 = arith.constant dense<0.000000e+00> : vector<8xf32>
    %15 = vector.multi_reduction <add>, %14, %cst_12 [1] : vector<8x128xf32> to vector<8xf32>
    %16 = vector.shape_cast %15 : vector<8xf32> to vector<8x1xf32>
    %cst_13 = arith.constant 1.280000e+02 : f32
    %17 = vector.broadcast %cst_13 : f32 to vector<8x1xf32>
    %18 = arith.divf %16, %17 : vector<8x1xf32>
    %19 = arith.mulf %13, %13 : vector<8x1xf32>
    %20 = arith.subf %18, %19 : vector<8x1xf32>
    %21 = vector.broadcast %13 : vector<8x1xf32> to vector<8x128xf32>
    %22 = arith.subf %7, %21 : vector<8x128xf32>
    %cst_14 = arith.constant 9.99999974E-6 : f32
    %23 = vector.broadcast %cst_14 : f32 to vector<8x1xf32>
    %24 = arith.addf %20, %23 : vector<8x1xf32>
    %25 = math.rsqrt %24 : vector<8x1xf32>
    %26 = vector.broadcast %25 : vector<8x1xf32> to vector<8x128xf32>
    %27 = arith.mulf %22, %26 : vector<8x128xf32>
    %28 = vector.broadcast %8 : vector<1x128xf32> to vector<8x128xf32>
    %29 = arith.mulf %27, %28 : vector<8x128xf32>
    %30 = vector.broadcast %9 : vector<1x128xf32> to vector<8x128xf32>
    %31 = arith.addf %29, %30 : vector<8x128xf32>
    %32 = arith.truncf %31 : vector<8x128xf32> to vector<8x128xbf16>
    %c0_15 = arith.constant 0 : index
    %c0_16 = arith.constant 0 : index
    %33 = vector.load %arg6[%c0_15, %c0_16] : memref<128x128xbf16, #tpu.memory_space<vmem>>, vector<128x128xbf16>
    %cst_17 = arith.constant dense<0.000000e+00> : vector<8x128xf32>
    %34 = tpu.matmul %32, %33, %cst_17 {dimension_numbers = #tpu.dot_dimension_numbers<[1], [0], [0], [1], [0, 0, 1, 1], [], []>} : vector<8x128xbf16>, vector<128x128xbf16>, vector<8x128xf32> -> vector<8x128xf32>
    %c0_18 = arith.constant 0 : index
    %c0_19 = arith.constant 0 : index
    %35 = vector.load %arg7[%c0_18, %c0_19] : memref<1x128xf32, #tpu.memory_space<vmem>>, vector<1x128xf32>
    %36 = vector.broadcast %35 : vector<1x128xf32> to vector<8x128xf32>
    %37 = arith.addf %34, %36 : vector<8x128xf32>
    %c0_20 = arith.constant 0 : index
    %c0_21 = arith.constant 0 : index
    %38 = vector.load %arg8[%c0_20, %c0_21] : memref<1x128xf32, #tpu.memory_space<vmem>>, vector<1x128xf32>
    %c0_22 = arith.constant 0 : index
    %c0_23 = arith.constant 0 : index
    %39 = vector.load %arg9[%c0_22, %c0_23] : memref<1x128xf32, #tpu.memory_space<vmem>>, vector<1x128xf32>
    %cst_24 = arith.constant dense<0.000000e+00> : vector<8xf32>
    %40 = vector.multi_reduction <add>, %37, %cst_24 [1] : vector<8x128xf32> to vector<8xf32>
    %41 = vector.shape_cast %40 : vector<8xf32> to vector<8x1xf32>
    %cst_25 = arith.constant 1.280000e+02 : f32
    %42 = vector.broadcast %cst_25 : f32 to vector<8x1xf32>
    %43 = arith.divf %41, %42 : vector<8x1xf32>
    %44 = arith.mulf %37, %37 : vector<8x128xf32>
    %cst_26 = arith.constant dense<0.000000e+00> : vector<8xf32>
    %45 = vector.multi_reduction <add>, %44, %cst_26 [1] : vector<8x128xf32> to vector<8xf32>
    %46 = vector.shape_cast %45 : vector<8xf32> to vector<8x1xf32>
    %cst_27 = arith.constant 1.280000e+02 : f32
    %47 = vector.broadcast %cst_27 : f32 to vector<8x1xf32>
    %48 = arith.divf %46, %47 : vector<8x1xf32>
    %49 = arith.mulf %43, %43 : vector<8x1xf32>
    %50 = arith.subf %48, %49 : vector<8x1xf32>
    %51 = vector.broadcast %43 : vector<8x1xf32> to vector<8x128xf32>
    %52 = arith.subf %37, %51 : vector<8x128xf32>
    %cst_28 = arith.constant 9.99999974E-6 : f32
    %53 = vector.broadcast %cst_28 : f32 to vector<8x1xf32>
    %54 = arith.addf %50, %53 : vector<8x1xf32>
    %55 = math.rsqrt %54 : vector<8x1xf32>
    %56 = vector.broadcast %55 : vector<8x1xf32> to vector<8x128xf32>
    %57 = arith.mulf %52, %56 : vector<8x128xf32>
    %58 = vector.broadcast %38 : vector<1x128xf32> to vector<8x128xf32>
    %59 = arith.mulf %57, %58 : vector<8x128xf32>
    %60 = vector.broadcast %39 : vector<1x128xf32> to vector<8x128xf32>
    %61 = arith.addf %59, %60 : vector<8x128xf32>
    %62 = arith.truncf %61 : vector<8x128xf32> to vector<8x128xbf16>
    %c0_29 = arith.constant 0 : index
    %c0_30 = arith.constant 0 : index
    %63 = vector.load %arg10[%c0_29, %c0_30] : memref<128x128xbf16, #tpu.memory_space<vmem>>, vector<128x128xbf16>
    %cst_31 = arith.constant dense<0.000000e+00> : vector<8x128xf32>
    %64 = tpu.matmul %62, %63, %cst_31 {dimension_numbers = #tpu.dot_dimension_numbers<[1], [0], [0], [1], [0, 0, 1, 1], [], []>} : vector<8x128xbf16>, vector<128x128xbf16>, vector<8x128xf32> -> vector<8x128xf32>
    %c0_32 = arith.constant 0 : index
    %c0_33 = arith.constant 0 : index
    %65 = vector.load %arg11[%c0_32, %c0_33] : memref<1x128xf32, #tpu.memory_space<vmem>>, vector<1x128xf32>
    %66 = vector.broadcast %65 : vector<1x128xf32> to vector<8x128xf32>
    %67 = arith.addf %64, %66 : vector<8x128xf32>
    %c0_34 = arith.constant 0 : index
    %c0_35 = arith.constant 0 : index
    %68 = vector.load %arg12[%c0_34, %c0_35] : memref<1x128xf32, #tpu.memory_space<vmem>>, vector<1x128xf32>
    %c0_36 = arith.constant 0 : index
    %c0_37 = arith.constant 0 : index
    %69 = vector.load %arg13[%c0_36, %c0_37] : memref<1x128xf32, #tpu.memory_space<vmem>>, vector<1x128xf32>
    %cst_38 = arith.constant dense<0.000000e+00> : vector<8xf32>
    %70 = vector.multi_reduction <add>, %67, %cst_38 [1] : vector<8x128xf32> to vector<8xf32>
    %71 = vector.shape_cast %70 : vector<8xf32> to vector<8x1xf32>
    %cst_39 = arith.constant 1.280000e+02 : f32
    %72 = vector.broadcast %cst_39 : f32 to vector<8x1xf32>
    %73 = arith.divf %71, %72 : vector<8x1xf32>
    %74 = arith.mulf %67, %67 : vector<8x128xf32>
    %cst_40 = arith.constant dense<0.000000e+00> : vector<8xf32>
    %75 = vector.multi_reduction <add>, %74, %cst_40 [1] : vector<8x128xf32> to vector<8xf32>
    %76 = vector.shape_cast %75 : vector<8xf32> to vector<8x1xf32>
    %cst_41 = arith.constant 1.280000e+02 : f32
    %77 = vector.broadcast %cst_41 : f32 to vector<8x1xf32>
    %78 = arith.divf %76, %77 : vector<8x1xf32>
    %79 = arith.mulf %73, %73 : vector<8x1xf32>
    %80 = arith.subf %78, %79 : vector<8x1xf32>
    %81 = vector.broadcast %73 : vector<8x1xf32> to vector<8x128xf32>
    %82 = arith.subf %67, %81 : vector<8x128xf32>
    %cst_42 = arith.constant 9.99999974E-6 : f32
    %83 = vector.broadcast %cst_42 : f32 to vector<8x1xf32>
    %84 = arith.addf %80, %83 : vector<8x1xf32>
    %85 = math.rsqrt %84 : vector<8x1xf32>
    %86 = vector.broadcast %85 : vector<8x1xf32> to vector<8x128xf32>
    %87 = arith.mulf %82, %86 : vector<8x128xf32>
    %88 = vector.broadcast %68 : vector<1x128xf32> to vector<8x128xf32>
    %89 = arith.mulf %87, %88 : vector<8x128xf32>
    %90 = vector.broadcast %69 : vector<1x128xf32> to vector<8x128xf32>
    %91 = arith.addf %89, %90 : vector<8x128xf32>
    %92 = arith.truncf %91 : vector<8x128xf32> to vector<8x128xbf16>
    %c0_43 = arith.constant 0 : index
    %c0_44 = arith.constant 0 : index
    %93 = vector.load %arg14[%c0_43, %c0_44] : memref<128x128xbf16, #tpu.memory_space<vmem>>, vector<128x128xbf16>
    %cst_45 = arith.constant dense<0.000000e+00> : vector<8x128xf32>
    %94 = tpu.matmul %92, %93, %cst_45 {dimension_numbers = #tpu.dot_dimension_numbers<[1], [0], [0], [1], [0, 0, 1, 1], [], []>} : vector<8x128xbf16>, vector<128x128xbf16>, vector<8x128xf32> -> vector<8x128xf32>
    %c0_46 = arith.constant 0 : index
    %c0_47 = arith.constant 0 : index
    %95 = vector.load %arg15[%c0_46, %c0_47] : memref<1x128xf32, #tpu.memory_space<vmem>>, vector<1x128xf32>
    %96 = vector.broadcast %95 : vector<1x128xf32> to vector<8x128xf32>
    %97 = arith.addf %94, %96 : vector<8x128xf32>
    %98 = arith.truncf %97 : vector<8x128xf32> to vector<8x128xbf16>
    %c0_48 = arith.constant 0 : index
    %c0_49 = arith.constant 0 : index
    %99 = vector.load %arg16[%c0_48, %c0_49] : memref<128x1280xbf16, #tpu.memory_space<vmem>>, vector<128x640xbf16>
    %cst_50 = arith.constant dense<0.000000e+00> : vector<8x640xf32>
    %100 = tpu.matmul %98, %99, %cst_50 {dimension_numbers = #tpu.dot_dimension_numbers<[1], [0], [0], [1], [0, 0, 1, 1], [], []>} : vector<8x128xbf16>, vector<128x640xbf16>, vector<8x640xf32> -> vector<8x640xf32>
    %c0_51 = arith.constant 0 : index
    %c0_52 = arith.constant 0 : index
    %101 = vector.load %arg17[%c0_51, %c0_52] : memref<1x1280xf32, #tpu.memory_space<vmem>>, vector<1x640xf32>
    %102 = vector.broadcast %101 : vector<1x640xf32> to vector<8x640xf32>
    %103 = arith.addf %100, %102 : vector<8x640xf32>
    %c0_53 = arith.constant 0 : index
    %c640 = arith.constant 640 : index
    %104 = vector.load %arg16[%c0_53, %c640] : memref<128x1280xbf16, #tpu.memory_space<vmem>>, vector<128x640xbf16>
    %cst_54 = arith.constant dense<0.000000e+00> : vector<8x640xf32>
    %105 = tpu.matmul %98, %104, %cst_54 {dimension_numbers = #tpu.dot_dimension_numbers<[1], [0], [0], [1], [0, 0, 1, 1], [], []>} : vector<8x128xbf16>, vector<128x640xbf16>, vector<8x640xf32> -> vector<8x640xf32>
    %c0_55 = arith.constant 0 : index
    %c640_56 = arith.constant 640 : index
    %106 = vector.load %arg17[%c0_55, %c640_56] : memref<1x1280xf32, #tpu.memory_space<vmem>>, vector<1x640xf32>
    %107 = vector.broadcast %106 : vector<1x640xf32> to vector<8x640xf32>
    %108 = arith.addf %105, %107 : vector<8x640xf32>
    %109 = vector.shape_cast %103 : vector<8x640xf32> to vector<1x8x640xf32>
    %110 = vector.shape_cast %108 : vector<8x640xf32> to vector<1x8x640xf32>
    %111 = arith.negf %109 : vector<1x8x640xf32>
    %112 = math.exp %111 : vector<1x8x640xf32>
    %cst_57 = arith.constant 1.000000e+00 : f32
    %113 = vector.broadcast %cst_57 : f32 to vector<1x8x640xf32>
    %114 = arith.addf %113, %112 : vector<1x8x640xf32>
    %115 = arith.divf %113, %114 : vector<1x8x640xf32>
    %cst_58 = arith.constant 1.000000e-07 : f32
    %cst_59 = arith.constant 0.99999988 : f32
    %116 = vector.broadcast %cst_58 : f32 to vector<1x8x640xf32>
    %117 = arith.maximumf %116, %115 : vector<1x8x640xf32>
    %118 = vector.broadcast %cst_59 : f32 to vector<1x8x640xf32>
    %119 = arith.minimumf %118, %117 : vector<1x8x640xf32>
    %cst_60 = arith.constant dense<0xFF800000> : vector<1x640xf32>
    %120 = vector.multi_reduction <maximumf>, %110, %cst_60 [1] : vector<1x8x640xf32> to vector<1x640xf32>
    %121 = vector.shape_cast %120 : vector<1x640xf32> to vector<1x1x640xf32>
    %122 = vector.broadcast %121 : vector<1x1x640xf32> to vector<1x8x640xf32>
    %123 = arith.subf %110, %122 : vector<1x8x640xf32>
    %124 = math.exp %123 : vector<1x8x640xf32>
    %cst_61 = arith.constant dense<0.000000e+00> : vector<1x640xf32>
    %125 = vector.multi_reduction <add>, %124, %cst_61 [1] : vector<1x8x640xf32> to vector<1x640xf32>
    %126 = arith.mulf %119, %124 : vector<1x8x640xf32>
    %cst_62 = arith.constant dense<0.000000e+00> : vector<1x640xf32>
    %127 = vector.multi_reduction <add>, %126, %cst_62 [1] : vector<1x8x640xf32> to vector<1x640xf32>
    %128 = tpu.reciprocal %125 {approx = true} : vector<1x640xf32> -> vector<1x640xf32>
    %129 = arith.mulf %127, %128 : vector<1x640xf32>
    %c0_63 = arith.constant 0 : index
    %c0_64 = arith.constant 0 : index
    %c0_65 = arith.constant 0 : index
    %130 = vector.load %arg18[%c0_63, %c0_64, %c0_65] : memref<1x1x640xf32, #tpu.memory_space<vmem>>, vector<1x1x640xf32>
    %131 = vector.shape_cast %130 : vector<1x1x640xf32> to vector<1x640xf32>
    %132 = vector.shape_cast %129 : vector<1x640xf32> to vector<1x1x640xf32>
    tpu.vector_store %arg18[%c0_63, %c0_64, %c0_65], %132 {strides = array<i32>} : memref<1x1x640xf32, #tpu.memory_space<vmem>>, vector<1x1x640xf32>,
    return
  }
  func.func @transform_0(%arg0: i32) -> (i32, i32, i32) {
    %c0_i32 = arith.constant 0 : i32
    %c0_i32_0 = arith.constant 0 : i32
    %c0_i32_1 = arith.constant 0 : i32
    return %arg0, %c0_i32, %c0_i32_0 : i32, i32, i32
  }
  func.func @transform_1(%arg0: i32) -> (i32, i32) {
    %c0_i32 = arith.constant 0 : i32
    %c0_i32_0 = arith.constant 0 : i32
    %c0_i32_1 = arith.constant 0 : i32
    return %c0_i32, %c0_i32_0 : i32, i32
  }
  func.func @transform_2(%arg0: i32) -> (i32, i32) {
    %c0_i32 = arith.constant 0 : i32
    %c0_i32_0 = arith.constant 0 : i32
    %c0_i32_1 = arith.constant 0 : i32
    return %c0_i32, %c0_i32_0 : i32, i32
  }
  func.func @transform_3(%arg0: i32) -> (i32, i32) {
    %c0_i32 = arith.constant 0 : i32
    %c0_i32_0 = arith.constant 0 : i32
    %c0_i32_1 = arith.constant 0 : i32
    return %c0_i32, %c0_i32_0 : i32, i32
  }
  func.func @transform_4(%arg0: i32) -> (i32, i32) {
    %c0_i32 = arith.constant 0 : i32
    %c0_i32_0 = arith.constant 0 : i32
    %c0_i32_1 = arith.constant 0 : i32
    return %c0_i32, %c0_i32_0 : i32, i32
  }
  func.func @transform_5(%arg0: i32) -> (i32, i32) {
    %c0_i32 = arith.constant 0 : i32
    %c0_i32_0 = arith.constant 0 : i32
    %c0_i32_1 = arith.constant 0 : i32
    return %c0_i32, %c0_i32_0 : i32, i32
  }
  func.func @transform_6(%arg0: i32) -> (i32, i32) {
    %c0_i32 = arith.constant 0 : i32
    %c0_i32_0 = arith.constant 0 : i32
    %c0_i32_1 = arith.constant 0 : i32
    return %c0_i32, %c0_i32_0 : i32, i32
  }
  func.func @transform_7(%arg0: i32) -> (i32, i32) {
    %c0_i32 = arith.constant 0 : i32
    %c0_i32_0 = arith.constant 0 : i32
    %c0_i32_1 = arith.constant 0 : i32
    return %c0_i32, %c0_i32_0 : i32, i32
  }
  func.func @transform_8(%arg0: i32) -> (i32, i32) {
    %c0_i32 = arith.constant 0 : i32
    %c0_i32_0 = arith.constant 0 : i32
    %c0_i32_1 = arith.constant 0 : i32
    return %c0_i32, %c0_i32_0 : i32, i32
  }
  func.func @transform_9(%arg0: i32) -> (i32, i32) {
    %c0_i32 = arith.constant 0 : i32
    %c0_i32_0 = arith.constant 0 : i32
    %c0_i32_1 = arith.constant 0 : i32
    return %c0_i32, %c0_i32_0 : i32, i32
  }
  func.func @transform_10(%arg0: i32) -> (i32, i32) {
    %c0_i32 = arith.constant 0 : i32
    %c0_i32_0 = arith.constant 0 : i32
    %c0_i32_1 = arith.constant 0 : i32
    return %c0_i32, %c0_i32_0 : i32, i32
  }
  func.func @transform_11(%arg0: i32) -> (i32, i32) {
    %c0_i32 = arith.constant 0 : i32
    %c0_i32_0 = arith.constant 0 : i32
    %c0_i32_1 = arith.constant 0 : i32
    return %c0_i32, %c0_i32_0 : i32, i32
  }
  func.func @transform_12(%arg0: i32) -> (i32, i32) {
    %c0_i32 = arith.constant 0 : i32
    %c0_i32_0 = arith.constant 0 : i32
    %c0_i32_1 = arith.constant 0 : i32
    return %c0_i32, %c0_i32_0 : i32, i32
  }
  func.func @transform_13(%arg0: i32) -> (i32, i32) {
    %c0_i32 = arith.constant 0 : i32
    %c0_i32_0 = arith.constant 0 : i32
    %c0_i32_1 = arith.constant 0 : i32
    return %c0_i32, %c0_i32_0 : i32, i32
  }
  func.func @transform_14(%arg0: i32) -> (i32, i32) {
    %c0_i32 = arith.constant 0 : i32
    %c0_i32_0 = arith.constant 0 : i32
    %c0_i32_1 = arith.constant 0 : i32
    return %c0_i32, %c0_i32_0 : i32, i32
  }
  func.func @transform_15(%arg0: i32) -> (i32, i32) {
    %c0_i32 = arith.constant 0 : i32
    %c0_i32_0 = arith.constant 0 : i32
    %c0_i32_1 = arith.constant 0 : i32
    return %c0_i32, %c0_i32_0 : i32, i32
  }
  func.func @transform_16(%arg0: i32) -> (i32, i32) {
    %c0_i32 = arith.constant 0 : i32
    %c0_i32_0 = arith.constant 0 : i32
    %c0_i32_1 = arith.constant 0 : i32
    return %c0_i32, %c0_i32_0 : i32, i32
  }
  func.func @transform_17(%arg0: i32) -> (i32, i32, i32) {
    %c0_i32 = arith.constant 0 : i32
    %c0_i32_0 = arith.constant 0 : i32
    %c0_i32_1 = arith.constant 0 : i32
    return %arg0, %c0_i32, %c0_i32_0 : i32, i32, i32
  }
}

</mosaic_0001>

<llo_original>
// kernel: linear_model_forward.1
$region0: #{linear_model_forward.1}
  #allocation0 [shape = 'u32[]', space=smem, size = 0x4, offset = 0x4, fixed_abs, tag = 'smem constant byte address 0x4 - core index']
  #allocation1 [shape = 'u32[144,128]{1,0:T(1,128)}', space=vmem, size = 0x12000, scoped, tag = 'internal scratch']
  %s0 = inlined_call_operand.hbm [shape: f32[2,8,64], index: 0, kind: input, shape index: {}]
  %s1 = inlined_call_operand.hbm [shape: bf16[64,128], index: 1, kind: input, shape index: {}]
  %s2 = inlined_call_operand.vmem [shape: f32[1,128], index: 2, kind: input, shape index: {}]
  %s3 = inlined_call_operand.vmem [shape: f32[1,128], index: 3, kind: input, shape index: {}]
  %s4 = inlined_call_operand.vmem [shape: f32[1,128], index: 4, kind: input, shape index: {}]
  %s5 = inlined_call_operand.hbm [shape: bf16[128,128], index: 5, kind: input, shape index: {}]
  %s6 = inlined_call_operand.vmem [shape: f32[1,128], index: 6, kind: input, shape index: {}]
  %s7 = inlined_call_operand.vmem [shape: f32[1,128], index: 7, kind: input, shape index: {}]
  %s8 = inlined_call_operand.vmem [shape: f32[1,128], index: 8, kind: input, shape index: {}]
  %s9 = inlined_call_operand.hbm [shape: bf16[128,128], index: 9, kind: input, shape index: {}]
  %s10 = inlined_call_operand.vmem [shape: f32[1,128], index: 10, kind: input, shape index: {}]
  %s11 = inlined_call_operand.vmem [shape: f32[1,128], index: 11, kind: input, shape index: {}]
  %s12 = inlined_call_operand.vmem [shape: f32[1,128], index: 12, kind: input, shape index: {}]
  %s13 = inlined_call_operand.hbm [shape: bf16[128,128], index: 13, kind: input, shape index: {}]
  %s14 = inlined_call_operand.vmem [shape: f32[1,128], index: 14, kind: input, shape index: {}]
  %s15 = inlined_call_operand.hbm [shape: bf16[128,1280], index: 15, kind: input, shape index: {}]
  %s16 = inlined_call_operand.vmem [shape: f32[1,1280], index: 16, kind: input, shape index: {}]
  %s17 = inlined_call_operand.vmem [shape: f32[2,1,640], index: 17, kind: output, shape index: {}]
  %s18 = sld [smem:[#allocation0]]
  $region125: #{linear_model_forward.1} parent=0
    _
  %s20 = ssub.s32 1, %s18
  %s21 = scalar_select 0, %s20, %s18
  $region1: #{linear_model_forward.1} parent=0
    #allocation2 [shape = 'u8[8192]{0}', space=vmem, size = 0x2000, scoped, tag = 'input window, operand 0']
    #allocation3 [shape = 's32[2]{0}', space=sflag, size = 0x8, scoped, tag = 'scoped memory for linear_model_forward.1']
    #allocation4 [shape = 'u8[16384]{0}', space=vmem, size = 0x4000, scoped, tag = 'input window, operand 1, single buffered']
    #allocation5 [shape = 's32[1]{0}', space=sflag, size = 0x4, scoped, tag = 'scoped memory for linear_model_forward.1']
    #allocation6 [shape = 'u8[32768]{0}', space=vmem, size = 0x8000, scoped, tag = 'input window, operand 5, single buffered']
    #allocation7 [shape = 'u8[32768]{0}', space=vmem, size = 0x8000, scoped, tag = 'input window, operand 9, single buffered']
    #allocation8 [shape = 's32[1]{0}', space=sflag, size = 0x4, scoped, tag = 'scoped memory for linear_model_forward.1']
    #allocation9 [shape = 'u8[32768]{0}', space=vmem, size = 0x8000, scoped, tag = 'input window, operand 13, single buffered']
    #allocation10 [shape = 'u8[327680]{0}', space=vmem, size = 0x50000, scoped, tag = 'input window, operand 15, single buffered']
    #allocation11 [shape = 's32[1]{0}', space=sflag, size = 0x4, scoped, tag = 'scoped memory for linear_model_forward.1']
    %22 = vsyncpa [#allocation3], 0
    %s23 = scalar_lea.sflag [#allocation3], 1
    %24 = vsyncpa %s23, 0
    %25 = vsyncpa [#allocation5], 0
    %26 = vsyncpa [#allocation8], 0
    %27 = vsyncpa [#allocation11], 0
    loop: start=0, step=1, limit=4
    $region2: #{linear_model_forward.1} parent=1 // loop_pre_header
      _
    $region3: #{linear_model_forward.1} parent=1 // loop_header
      %s29 = sphi 0, %s33
      %p30 = scmp.ge.s32.totalorder %s29, 4
      %s39 = sphi 0, %s41
      %s42 = sphi 0, %s39
      %s43 = sphi 0, %s42
      %s59 = sphi 0, %s43
      %s63 = sphi 0, %s63
      %s65 = sphi 0, %s63
      %s66 = sphi 0, %s65
      %s80 = sphi 0, %s66
      %s84 = sphi 0, %s84
      %s86 = sphi 0, %s84
      %s87 = sphi 0, %s86
      %s101 = sphi 0, %s87
      %s105 = sphi 0, %s105
      %s107 = sphi 0, %s105
      %s108 = sphi 0, %s107
      %s122 = sphi 0, %s108
      %s126 = sphi 0, %s126
      %s128 = sphi 0, %s126
      %s129 = sphi 0, %s128
      %s143 = sphi 0, %s129
      %s147 = sphi 0, %s147
      %s149 = sphi 0, %s147
      %s150 = sphi 0, %s149
      %s164 = sphi 0, %s150
      %s168 = sphi 0, %s168
      %s170 = sphi 0, %s168
      %s171 = sphi 0, %s170
      %s185 = sphi 0, %s171
      %s189 = sphi 0, %s189
      %s191 = sphi 0, %s189
      %s192 = sphi 0, %s191
      %s206 = sphi 0, %s192
      %s210 = sphi 0, %s210
      %s212 = sphi 0, %s210
      %s213 = sphi 0, %s212
      %s227 = sphi 0, %s213
      %s231 = sphi 0, %s231
      %s233 = sphi 0, %s231
      %s234 = sphi 0, %s233
      %s248 = sphi 0, %s234
      %s252 = sphi 0, %s252
      %s254 = sphi 0, %s252
      %s255 = sphi 0, %s254
      %s269 = sphi 0, %s255
      %s273 = sphi 0, %s273
      %s275 = sphi 0, %s273
      %s276 = sphi 0, %s275
      %s290 = sphi 0, %s276
      %s294 = sphi 0, %s294
      %s296 = sphi 0, %s294
      %s297 = sphi 0, %s296
      %s311 = sphi 0, %s297
      %s315 = sphi 0, %s315
      %s317 = sphi 0, %s315
      %s318 = sphi 0, %s317
      %s332 = sphi 0, %s318
      %s336 = sphi 0, %s336
      %s338 = sphi 0, %s336
      %s339 = sphi 0, %s338
      %s353 = sphi 0, %s339
      %s357 = sphi 0, %s357
      %s359 = sphi 0, %s357
      %s360 = sphi 0, %s359
      %s374 = sphi 0, %s360
      %s378 = sphi 0, %s378
      %s380 = sphi 0, %s378
      %s381 = sphi 0, %s380
      %s395 = sphi 0, %s381
      %s401 = sphi 0, %s403
      %s404 = sphi 0, %s401
      %s405 = sphi 0, %s404
      %s421 = sphi 0, %s405
    $region4: #{linear_model_forward.1} parent=1 // loop_header_branch
      %32 = sbr.rel (%p30) target = $region8
    $region5: #{linear_model_forward.1} parent=1 // loop_body
      %s34 = ssub.s32 %s29, 1
      %s35 = ssub.s32 %s29, 2
      %s36 = sadd.s32 %s29, 1
      %s37 = ssub.s32 %s29, %s36
      %p38 = scmp.eq.s32.totalorder %s37, 0
      %s40 = sadd.s32 %s39, 1
      %s41 = scalar_select %p38, %s39, %s40
      %p44 = pneg %p38
      %p45 = scmp.eq.s32.totalorder %s29, 1
      %p46 = por %p44, %p45
      %p47 = scmp.ne.s32.totalorder %s39, %s42
      %p48 = scmp.eq.s32.totalorder %s29, 0
      %p49 = por %p47, %p48
      %p50 = scmp.ne.s32.totalorder %s39, %s42
      %p51 = scmp.eq.s32.totalorder %s34, 1
      %p52 = por %p50, %p51
      %p53 = scmp.ne.s32.totalorder %s42, %s43
      %p54 = scmp.eq.s32.totalorder %s34, 0
      %p55 = por %p53, %p54
      %p56 = scmp.ne.s32.totalorder %s42, %s43
      %p57 = scmp.eq.s32.totalorder %s35, 1
      %p58 = por %p56, %p57
      %p60 = scmp.ne.s32.totalorder %s43, %s59
      %p61 = scmp.eq.s32.totalorder %s35, 0
      %p62 = por %p60, %p61
      %s64 = sadd.s32 %s63, 1
      %p67 = scmp.eq.s32.totalorder %s29, 1
      %p68 = scmp.ne.s32.totalorder %s63, %s65
      %p69 = scmp.eq.s32.totalorder %s29, 0
      %p70 = por %p68, %p69
      %p71 = scmp.ne.s32.totalorder %s63, %s65
      %p72 = scmp.eq.s32.totalorder %s34, 1
      %p73 = por %p71, %p72
      %p74 = scmp.ne.s32.totalorder %s65, %s66
      %p75 = scmp.eq.s32.totalorder %s34, 0
      %p76 = por %p74, %p75
      %p77 = scmp.ne.s32.totalorder %s65, %s66
      %p78 = scmp.eq.s32.totalorder %s35, 1
      %p79 = por %p77, %p78
      %p81 = scmp.ne.s32.totalorder %s66, %s80
      %p82 = scmp.eq.s32.totalorder %s35, 0
      %p83 = por %p81, %p82
      %s85 = sadd.s32 %s84, 1
      %p88 = scmp.eq.s32.totalorder %s29, 1
      %p89 = scmp.ne.s32.totalorder %s84, %s86
      %p90 = scmp.eq.s32.totalorder %s29, 0
      %p91 = por %p89, %p90
      %p92 = scmp.ne.s32.totalorder %s84, %s86
      %p93 = scmp.eq.s32.totalorder %s34, 1
      %p94 = por %p92, %p93
      %p95 = scmp.ne.s32.totalorder %s86, %s87
      %p96 = scmp.eq.s32.totalorder %s34, 0
      %p97 = por %p95, %p96
      %p98 = scmp.ne.s32.totalorder %s86, %s87
      %p99 = scmp.eq.s32.totalorder %s35, 1
      %p100 = por %p98, %p99
      %p102 = scmp.ne.s32.totalorder %s87, %s101
      %p103 = scmp.eq.s32.totalorder %s35, 0
      %p104 = por %p102, %p103
      %s106 = sadd.s32 %s105, 1
      %p109 = scmp.eq.s32.totalorder %s29, 1
      %p110 = scmp.ne.s32.totalorder %s105, %s107
      %p111 = scmp.eq.s32.totalorder %s29, 0
      %p112 = por %p110, %p111
      %p113 = scmp.ne.s32.totalorder %s105, %s107
      %p114 = scmp.eq.s32.totalorder %s34, 1
      %p115 = por %p113, %p114
      %p116 = scmp.ne.s32.totalorder %s107, %s108
      %p117 = scmp.eq.s32.totalorder %s34, 0
      %p118 = por %p116, %p117
      %p119 = scmp.ne.s32.totalorder %s107, %s108
      %p120 = scmp.eq.s32.totalorder %s35, 1
      %p121 = por %p119, %p120
      %p123 = scmp.ne.s32.totalorder %s108, %s122
      %p124 = scmp.eq.s32.totalorder %s35, 0
      %p125 = por %p123, %p124
      %s127 = sadd.s32 %s126, 1
      %p130 = scmp.eq.s32.totalorder %s29, 1
      %p131 = scmp.ne.s32.totalorder %s126, %s128
      %p132 = scmp.eq.s32.totalorder %s29, 0
      %p133 = por %p131, %p132
      %p134 = scmp.ne.s32.totalorder %s126, %s128
      %p135 = scmp.eq.s32.totalorder %s34, 1
      %p136 = por %p134, %p135
      %p137 = scmp.ne.s32.totalorder %s128, %s129
      %p138 = scmp.eq.s32.totalorder %s34, 0
      %p139 = por %p137, %p138
      %p140 = scmp.ne.s32.totalorder %s128, %s129
      %p141 = scmp.eq.s32.totalorder %s35, 1
      %p142 = por %p140, %p141
      %p144 = scmp.ne.s32.totalorder %s129, %s143
      %p145 = scmp.eq.s32.totalorder %s35, 0
      %p146 = por %p144, %p145
      %s148 = sadd.s32 %s147, 1
      %p151 = scmp.eq.s32.totalorder %s29, 1
      %p152 = scmp.ne.s32.totalorder %s147, %s149
      %p153 = scmp.eq.s32.totalorder %s29, 0
      %p154 = por %p152, %p153
      %p155 = scmp.ne.s32.totalorder %s147, %s149
      %p156 = scmp.eq.s32.totalorder %s34, 1
      %p157 = por %p155, %p156
      %p158 = scmp.ne.s32.totalorder %s149, %s150
      %p159 = scmp.eq.s32.totalorder %s34, 0
      %p160 = por %p158, %p159
      %p161 = scmp.ne.s32.totalorder %s149, %s150
      %p162 = scmp.eq.s32.totalorder %s35, 1
      %p163 = por %p161, %p162
      %p165 = scmp.ne.s32.totalorder %s150, %s164
      %p166 = scmp.eq.s32.totalorder %s35, 0
      %p167 = por %p165, %p166
      %s169 = sadd.s32 %s168, 1
      %p172 = scmp.eq.s32.totalorder %s29, 1
      %p173 = scmp.ne.s32.totalorder %s168, %s170
      %p174 = scmp.eq.s32.totalorder %s29, 0
      %p175 = por %p173, %p174
      %p176 = scmp.ne.s32.totalorder %s168, %s170
      %p177 = scmp.eq.s32.totalorder %s34, 1
      %p178 = por %p176, %p177
      %p179 = scmp.ne.s32.totalorder %s170, %s171
      %p180 = scmp.eq.s32.totalorder %s34, 0
      %p181 = por %p179, %p180
      %p182 = scmp.ne.s32.totalorder %s170, %s171
      %p183 = scmp.eq.s32.totalorder %s35, 1
      %p184 = por %p182, %p183
      %p186 = scmp.ne.s32.totalorder %s171, %s185
      %p187 = scmp.eq.s32.totalorder %s35, 0
      %p188 = por %p186, %p187
      %s190 = sadd.s32 %s189, 1
      %p193 = scmp.eq.s32.totalorder %s29, 1
      %p194 = scmp.ne.s32.totalorder %s189, %s191
      %p195 = scmp.eq.s32.totalorder %s29, 0
      %p196 = por %p194, %p195
      %p197 = scmp.ne.s32.totalorder %s189, %s191
      %p198 = scmp.eq.s32.totalorder %s34, 1
      %p199 = por %p197, %p198
      %p200 = scmp.ne.s32.totalorder %s191, %s192
      %p201 = scmp.eq.s32.totalorder %s34, 0
      %p202 = por %p200, %p201
      %p203 = scmp.ne.s32.totalorder %s191, %s192
      %p204 = scmp.eq.s32.totalorder %s35, 1
      %p205 = por %p203, %p204
      %p207 = scmp.ne.s32.totalorder %s192, %s206
      %p208 = scmp.eq.s32.totalorder %s35, 0
      %p209 = por %p207, %p208
      %s211 = sadd.s32 %s210, 1
      %p214 = scmp.eq.s32.totalorder %s29, 1
      %p215 = scmp.ne.s32.totalorder %s210, %s212
      %p216 = scmp.eq.s32.totalorder %s29, 0
      %p217 = por %p215, %p216
      %p218 = scmp.ne.s32.totalorder %s210, %s212
      %p219 = scmp.eq.s32.totalorder %s34, 1
      %p220 = por %p218, %p219
      %p221 = scmp.ne.s32.totalorder %s212, %s213
      %p222 = scmp.eq.s32.totalorder %s34, 0
      %p223 = por %p221, %p222
      %p224 = scmp.ne.s32.totalorder %s212, %s213
      %p225 = scmp.eq.s32.totalorder %s35, 1
      %p226 = por %p224, %p225
      %p228 = scmp.ne.s32.totalorder %s213, %s227
      %p229 = scmp.eq.s32.totalorder %s35, 0
      %p230 = por %p228, %p229
      %s232 = sadd.s32 %s231, 1
      %p235 = scmp.eq.s32.totalorder %s29, 1
      %p236 = scmp.ne.s32.totalorder %s231, %s233
      %p237 = scmp.eq.s32.totalorder %s29, 0
      %p238 = por %p236, %p237
      %p239 = scmp.ne.s32.totalorder %s231, %s233
      %p240 = scmp.eq.s32.totalorder %s34, 1
      %p241 = por %p239, %p240
      %p242 = scmp.ne.s32.totalorder %s233, %s234
      %p243 = scmp.eq.s32.totalorder %s34, 0
      %p244 = por %p242, %p243
      %p245 = scmp.ne.s32.totalorder %s233, %s234
      %p246 = scmp.eq.s32.totalorder %s35, 1
      %p247 = por %p245, %p246
      %p249 = scmp.ne.s32.totalorder %s234, %s248
      %p250 = scmp.eq.s32.totalorder %s35, 0
      %p251 = por %p249, %p250
      %s253 = sadd.s32 %s252, 1
      %p256 = scmp.eq.s32.totalorder %s29, 1
      %p257 = scmp.ne.s32.totalorder %s252, %s254
      %p258 = scmp.eq.s32.totalorder %s29, 0
      %p259 = por %p257, %p258
      %p260 = scmp.ne.s32.totalorder %s252, %s254
      %p261 = scmp.eq.s32.totalorder %s34, 1
      %p262 = por %p260, %p261
      %p263 = scmp.ne.s32.totalorder %s254, %s255
      %p264 = scmp.eq.s32.totalorder %s34, 0
      %p265 = por %p263, %p264
      %p266 = scmp.ne.s32.totalorder %s254, %s255
      %p267 = scmp.eq.s32.totalorder %s35, 1
      %p268 = por %p266, %p267
      %p270 = scmp.ne.s32.totalorder %s255, %s269
      %p271 = scmp.eq.s32.totalorder %s35, 0
      %p272 = por %p270, %p271
      %s274 = sadd.s32 %s273, 1
      %p277 = scmp.eq.s32.totalorder %s29, 1
      %p278 = scmp.ne.s32.totalorder %s273, %s275
      %p279 = scmp.eq.s32.totalorder %s29, 0
      %p280 = por %p278, %p279
      %p281 = scmp.ne.s32.totalorder %s273, %s275
      %p282 = scmp.eq.s32.totalorder %s34, 1
      %p283 = por %p281, %p282
      %p284 = scmp.ne.s32.totalorder %s275, %s276
      %p285 = scmp.eq.s32.totalorder %s34, 0
      %p286 = por %p284, %p285
      %p287 = scmp.ne.s32.totalorder %s275, %s276
      %p288 = scmp.eq.s32.totalorder %s35, 1
      %p289 = por %p287, %p288
      %p291 = scmp.ne.s32.totalorder %s276, %s290
      %p292 = scmp.eq.s32.totalorder %s35, 0
      %p293 = por %p291, %p292
      %s295 = sadd.s32 %s294, 1
      %p298 = scmp.eq.s32.totalorder %s29, 1
      %p299 = scmp.ne.s32.totalorder %s294, %s296
      %p300 = scmp.eq.s32.totalorder %s29, 0
      %p301 = por %p299, %p300
      %p302 = scmp.ne.s32.totalorder %s294, %s296
      %p303 = scmp.eq.s32.totalorder %s34, 1
      %p304 = por %p302, %p303
      %p305 = scmp.ne.s32.totalorder %s296, %s297
      %p306 = scmp.eq.s32.totalorder %s34, 0
      %p307 = por %p305, %p306
      %p308 = scmp.ne.s32.totalorder %s296, %s297
      %p309 = scmp.eq.s32.totalorder %s35, 1
      %p310 = por %p308, %p309
      %p312 = scmp.ne.s32.totalorder %s297, %s311
      %p313 = scmp.eq.s32.totalorder %s35, 0
      %p314 = por %p312, %p313
      %s316 = sadd.s32 %s315, 1
      %p319 = scmp.eq.s32.totalorder %s29, 1
      %p320 = scmp.ne.s32.totalorder %s315, %s317
      %p321 = scmp.eq.s32.totalorder %s29, 0
      %p322 = por %p320, %p321
      %p323 = scmp.ne.s32.totalorder %s315, %s317
      %p324 = scmp.eq.s32.totalorder %s34, 1
      %p325 = por %p323, %p324
      %p326 = scmp.ne.s32.totalorder %s317, %s318
      %p327 = scmp.eq.s32.totalorder %s34, 0
      %p328 = por %p326, %p327
      %p329 = scmp.ne.s32.totalorder %s317, %s318
      %p330 = scmp.eq.s32.totalorder %s35, 1
      %p331 = por %p329, %p330
      %p333 = scmp.ne.s32.totalorder %s318, %s332
      %p334 = scmp.eq.s32.totalorder %s35, 0
      %p335 = por %p333, %p334
      %s337 = sadd.s32 %s336, 1
      %p340 = scmp.eq.s32.totalorder %s29, 1
      %p341 = scmp.ne.s32.totalorder %s336, %s338
      %p342 = scmp.eq.s32.totalorder %s29, 0
      %p343 = por %p341, %p342
      %p344 = scmp.ne.s32.totalorder %s336, %s338
      %p345 = scmp.eq.s32.totalorder %s34, 1
      %p346 = por %p344, %p345
      %p347 = scmp.ne.s32.totalorder %s338, %s339
      %p348 = scmp.eq.s32.totalorder %s34, 0
      %p349 = por %p347, %p348
      %p350 = scmp.ne.s32.totalorder %s338, %s339
      %p351 = scmp.eq.s32.totalorder %s35, 1
      %p352 = por %p350, %p351
      %p354 = scmp.ne.s32.totalorder %s339, %s353
      %p355 = scmp.eq.s32.totalorder %s35, 0
      %p356 = por %p354, %p355
      %s358 = sadd.s32 %s357, 1
      %p361 = scmp.eq.s32.totalorder %s29, 1
      %p362 = scmp.ne.s32.totalorder %s357, %s359
      %p363 = scmp.eq.s32.totalorder %s29, 0
      %p364 = por %p362, %p363
      %p365 = scmp.ne.s32.totalorder %s357, %s359
      %p366 = scmp.eq.s32.totalorder %s34, 1
      %p367 = por %p365, %p366
      %p368 = scmp.ne.s32.totalorder %s359, %s360
      %p369 = scmp.eq.s32.totalorder %s34, 0
      %p370 = por %p368, %p369
      %p371 = scmp.ne.s32.totalorder %s359, %s360
      %p372 = scmp.eq.s32.totalorder %s35, 1
      %p373 = por %p371, %p372
      %p375 = scmp.ne.s32.totalorder %s360, %s374
      %p376 = scmp.eq.s32.totalorder %s35, 0
      %p377 = por %p375, %p376
      %s379 = sadd.s32 %s378, 1
      %p382 = scmp.eq.s32.totalorder %s29, 1
      %p383 = scmp.ne.s32.totalorder %s378, %s380
      %p384 = scmp.eq.s32.totalorder %s29, 0
      %p385 = por %p383, %p384
      %p386 = scmp.ne.s32.totalorder %s378, %s380
      %p387 = scmp.eq.s32.totalorder %s34, 1
      %p388 = por %p386, %p387
      %p389 = scmp.ne.s32.totalorder %s380, %s381
      %p390 = scmp.eq.s32.totalorder %s34, 0
      %p391 = por %p389, %p390
      %p392 = scmp.ne.s32.totalorder %s380, %s381
      %p393 = scmp.eq.s32.totalorder %s35, 1
      %p394 = por %p392, %p393
      %p396 = scmp.ne.s32.totalorder %s381, %s395
      %p397 = scmp.eq.s32.totalorder %s35, 0
      %p398 = por %p396, %p397
      %s399 = ssub.s32 %s29, %s36
      %p400 = scmp.eq.s32.totalorder %s399, 0
      %s402 = sadd.s32 %s401, 1
      %s403 = scalar_select %p400, %s401, %s402
      %p406 = pneg %p400
      %p407 = scmp.eq.s32.totalorder %s29, 1
      %p408 = por %p406, %p407
      %p409 = scmp.ne.s32.totalorder %s401, %s404
      %p410 = scmp.eq.s32.totalorder %s29, 0
      %p411 = por %p409, %p410
      %p412 = scmp.ne.s32.totalorder %s401, %s404
      %p413 = scmp.eq.s32.totalorder %s34, 1
      %p414 = por %p412, %p413
      %p415 = scmp.ne.s32.totalorder %s404, %s405
      %p416 = scmp.eq.s32.totalorder %s34, 0
      %p417 = por %p415, %p416
      %p418 = scmp.ne.s32.totalorder %s404, %s405
      %p419 = scmp.eq.s32.totalorder %s35, 1
      %p420 = por %p418, %p419
      %p422 = scmp.ne.s32.totalorder %s405, %s421
      %p423 = scmp.eq.s32.totalorder %s35, 0
      %p424 = por %p422, %p423
      %p425 = scmp.le.s32.totalorder 1, %s29
      %p426 = scmp.lt.s32.totalorder %s29, 3
      %p427 = pnand %p425, %p426
      %p428 = pneg %p427
      // Predicated region
      $region9: #{linear_model_forward.1} parent=5 // pred_check
        _
      $region10: #{linear_model_forward.1} parent=5 // pred_check_branch
        %430 = sbr.rel (%p427) target = $region12
      $region11: #{linear_model_forward.1} parent=5 // pred_region
        %s431 = ssub.s32 %s29, 1
        // Predicated region
        $region13: #{linear_model_forward.1} parent=11 // pred_check
          %p432 = pneg %p76
        $region14: #{linear_model_forward.1} parent=11 // pred_check_branch
          %434 = sbr.rel (%p432) target = $region16
        $region15: #{linear_model_forward.1} parent=11 // pred_region
          %s436 = ssub.s32 512, 512
          %437 = vsyncadd [#allocation5], %s436
          %s438 = sshll.u32 [#allocation4], 4
          %s439 = int_to_ptr.vmem [resolvable:$true] %s438
          %444 = dma.hbm_to_vmem [thread:$0]  %s1, 512, %s439, [#allocation5], 64, 64, 4
        $region16: #{linear_model_forward.1} parent=11 // pred_fallthru
          _
        // Predicated region
        $region17: #{linear_model_forward.1} parent=11 // pred_check
          %p445 = pneg %p97
        $region18: #{linear_model_forward.1} parent=11 // pred_check_branch
          %447 = sbr.rel (%p445) target = $region20
        $region19: #{linear_model_forward.1} parent=11 // pred_region
          _
        $region20: #{linear_model_forward.1} parent=11 // pred_fallthru
          _
        // Predicated region
        $region21: #{linear_model_forward.1} parent=11 // pred_check
          %p448 = pneg %p118
        $region22: #{linear_model_forward.1} parent=11 // pred_check_branch
          %450 = sbr.rel (%p448) target = $region24
        $region23: #{linear_model_forward.1} parent=11 // pred_region
          _
        $region24: #{linear_model_forward.1} parent=11 // pred_fallthru
          _
        // Predicated region
        $region25: #{linear_model_forward.1} parent=11 // pred_check
          %p451 = pneg %p139
        $region26: #{linear_model_forward.1} parent=11 // pred_check_branch
          %453 = sbr.rel (%p451) target = $region28
        $region27: #{linear_model_forward.1} parent=11 // pred_region
          _
        $region28: #{linear_model_forward.1} parent=11 // pred_fallthru
          _
        // Predicated region
        $region29: #{linear_model_forward.1} parent=11 // pred_check
          %p454 = pneg %p160
        $region30: #{linear_model_forward.1} parent=11 // pred_check_branch
          %456 = sbr.rel (%p454) target = $region32
        $region31: #{linear_model_forward.1} parent=11 // pred_region
          %s458 = ssub.s32 1024, 1024
          %459 = vsyncadd [#allocation5], %s458
          %s460 = sshll.u32 [#allocation6], 4
          %s461 = int_to_ptr.vmem [resolvable:$true] %s460
          %466 = dma.hbm_to_vmem [thread:$0]  %s5, 1024, %s461, [#allocation5], 64, 64, 4
        $region32: #{linear_model_forward.1} parent=11 // pred_fallthru
          _
        // Predicated region
        $region33: #{linear_model_forward.1} parent=11 // pred_check
          %p467 = pneg %p181
        $region34: #{linear_model_forward.1} parent=11 // pred_check_branch
          %469 = sbr.rel (%p467) target = $region36
        $region35: #{linear_model_forward.1} parent=11 // pred_region
          _
        $region36: #{linear_model_forward.1} parent=11 // pred_fallthru
          _
        // Predicated region
        $region37: #{linear_model_forward.1} parent=11 // pred_check
          %p470 = pneg %p202
        $region38: #{linear_model_forward.1} parent=11 // pred_check_branch
          %472 = sbr.rel (%p470) target = $region40
        $region39: #{linear_model_forward.1} parent=11 // pred_region
          _
        $region40: #{linear_model_forward.1} parent=11 // pred_fallthru
          _
        // Predicated region
        $region41: #{linear_model_forward.1} parent=11 // pred_check
          %p473 = pneg %p223
        $region42: #{linear_model_forward.1} parent=11 // pred_check_branch
          %475 = sbr.rel (%p473) target = $region44
        $region43: #{linear_model_forward.1} parent=11 // pred_region
          _
        $region44: #{linear_model_forward.1} parent=11 // pred_fallthru
          _
        // Predicated region
        $region45: #{linear_model_forward.1} parent=11 // pred_check
          %p476 = pneg %p244
        $region46: #{linear_model_forward.1} parent=11 // pred_check_branch
          %478 = sbr.rel (%p476) target = $region48
        $region47: #{linear_model_forward.1} parent=11 // pred_region
          %s480 = ssub.s32 1024, 1024
          %481 = vsyncadd [#allocation8], %s480
          %s482 = sshll.u32 [#allocation7], 4
          %s483 = int_to_ptr.vmem [resolvable:$true] %s482
          %488 = dma.hbm_to_vmem [thread:$0]  %s9, 1024, %s483, [#allocation8], 64, 64, 4
        $region48: #{linear_model_forward.1} parent=11 // pred_fallthru
          _
        // Predicated region
        $region49: #{linear_model_forward.1} parent=11 // pred_check
          %p489 = pneg %p265
        $region50: #{linear_model_forward.1} parent=11 // pred_check_branch
          %491 = sbr.rel (%p489) target = $region52
        $region51: #{linear_model_forward.1} parent=11 // pred_region
          _
        $region52: #{linear_model_forward.1} parent=11 // pred_fallthru
          _
        // Predicated region
        $region53: #{linear_model_forward.1} parent=11 // pred_check
          %p492 = pneg %p286
        $region54: #{linear_model_forward.1} parent=11 // pred_check_branch
          %494 = sbr.rel (%p492) target = $region56
        $region55: #{linear_model_forward.1} parent=11 // pred_region
          _
        $region56: #{linear_model_forward.1} parent=11 // pred_fallthru
          _
        // Predicated region
        $region57: #{linear_model_forward.1} parent=11 // pred_check
          %p495 = pneg %p307
        $region58: #{linear_model_forward.1} parent=11 // pred_check_branch
          %497 = sbr.rel (%p495) target = $region60
        $region59: #{linear_model_forward.1} parent=11 // pred_region
          _
        $region60: #{linear_model_forward.1} parent=11 // pred_fallthru
          _
        // Predicated region
        $region61: #{linear_model_forward.1} parent=11 // pred_check
          %p498 = pneg %p328
        $region62: #{linear_model_forward.1} parent=11 // pred_check_branch
          %500 = sbr.rel (%p498) target = $region64
        $region63: #{linear_model_forward.1} parent=11 // pred_region
          %s502 = ssub.s32 1024, 1024
          %503 = vsyncadd [#allocation8], %s502
          %s504 = sshll.u32 [#allocation9], 4
          %s505 = int_to_ptr.vmem [resolvable:$true] %s504
          %510 = dma.hbm_to_vmem [thread:$0]  %s13, 1024, %s505, [#allocation8], 64, 64, 4
        $region64: #{linear_model_forward.1} parent=11 // pred_fallthru
          _
        // Predicated region
        $region65: #{linear_model_forward.1} parent=11 // pred_check
          %p511 = pneg %p349
        $region66: #{linear_model_forward.1} parent=11 // pred_check_branch
          %513 = sbr.rel (%p511) target = $region68
        $region67: #{linear_model_forward.1} parent=11 // pred_region
          _
        $region68: #{linear_model_forward.1} parent=11 // pred_fallthru
          _
        // Predicated region
        $region69: #{linear_model_forward.1} parent=11 // pred_check
          %p514 = pneg %p370
        $region70: #{linear_model_forward.1} parent=11 // pred_check_branch
          %516 = sbr.rel (%p514) target = $region72
        $region71: #{linear_model_forward.1} parent=11 // pred_region
          %s518 = ssub.s32 10240, 10240
          %519 = vsyncadd [#allocation11], %s518
          %s520 = sshll.u32 [#allocation10], 4
          %s521 = int_to_ptr.vmem [resolvable:$true] %s520
          %526 = dma.hbm_to_vmem [thread:$0]  %s15, 10240, %s521, [#allocation11], 640, 640, 40
        $region72: #{linear_model_forward.1} parent=11 // pred_fallthru
          _
        // Predicated region
        $region73: #{linear_model_forward.1} parent=11 // pred_check
          %p527 = pneg %p391
        $region74: #{linear_model_forward.1} parent=11 // pred_check_branch
          %529 = sbr.rel (%p527) target = $region76
        $region75: #{linear_model_forward.1} parent=11 // pred_region
          _
        $region76: #{linear_model_forward.1} parent=11 // pred_fallthru
          _
      $region12: #{linear_model_forward.1} parent=5 // pred_fallthru
        _
      %p530 = scmp.lt.s32.totalorder %s29, 2
      // Predicated region
      $region77: #{linear_model_forward.1} parent=5 // pred_check
        %p531 = pneg %p530
      $region78: #{linear_model_forward.1} parent=5 // pred_check_branch
        %533 = sbr.rel (%p531) target = $region80
      $region79: #{linear_model_forward.1} parent=5 // pred_region
        // Predicated region
        $region81: #{linear_model_forward.1} parent=79 // pred_check
          %p534 = pneg %p49
        $region82: #{linear_model_forward.1} parent=79 // pred_check_branch
          %536 = sbr.rel (%p534) target = $region84
        $region83: #{linear_model_forward.1} parent=79 // pred_region
          %s537 = sand.u32 %s39, 1
          %s538 = scalar_lea.sflag [#allocation3], %s537
          %s539 = sand.u32 %s39, 1
          %s540 = smul.addr %s539, 8
          %s541 = scalar_lea.vmem [#allocation2], %s540
          %s543 = ssub.s32 128, 128
          %544 = vsyncadd %s538, %s543
          %s545 = smul.addr %s29, 128
          %s546 = scalar_lea.hbm %s0, %s545
          %s548 = sshll.u32 %s541, 4
          %s549 = int_to_ptr.vmem [resolvable:$true] %s548
          %551 = dma.hbm_to_vmem [thread:$0]  %s546, 128, %s549, %s538
        $region84: #{linear_model_forward.1} parent=79 // pred_fallthru
          _
      $region80: #{linear_model_forward.1} parent=5 // pred_fallthru
        _
      %p552 = scmp.le.s32.totalorder 1, %s29
      %p553 = scmp.lt.s32.totalorder %s29, 3
      %p554 = pnand %p552, %p553
      %p555 = pneg %p554
      // Predicated region
      $region85: #{linear_model_forward.1} parent=5 // pred_check
        _
      $region86: #{linear_model_forward.1} parent=5 // pred_check_branch
        %557 = sbr.rel (%p554) target = $region88
      $region87: #{linear_model_forward.1} parent=5 // pred_region
        %s558 = ssub.s32 %s29, 1
        %s559 = sand.u32 %s42, 1
        %s560 = scalar_lea.sflag [#allocation3], %s559
        %s561 = sand.u32 %s42, 1
        %s562 = smul.addr %s561, 8
        %s563 = scalar_lea.vmem [#allocation2], %s562
        // Predicated region
        $region89: #{linear_model_forward.1} parent=87 // pred_check
          %p564 = pneg %p55
        $region90: #{linear_model_forward.1} parent=87 // pred_check_branch
          %566 = sbr.rel (%p564) target = $region92
        $region91: #{linear_model_forward.1} parent=87 // pred_region
          %567 = dma.done %s560, 128
        $region92: #{linear_model_forward.1} parent=87 // pred_fallthru
          _
        // Predicated region
        $region93: #{linear_model_forward.1} parent=87 // pred_check
          %p568 = pneg %p76
        $region94: #{linear_model_forward.1} parent=87 // pred_check_branch
          %570 = sbr.rel (%p568) target = $region96
        $region95: #{linear_model_forward.1} parent=87 // pred_region
          %571 = dma.done [#allocation5], 512
        $region96: #{linear_model_forward.1} parent=87 // pred_fallthru
          _
        // Predicated region
        $region97: #{linear_model_forward.1} parent=87 // pred_check
          %p572 = pneg %p160
        $region98: #{linear_model_forward.1} parent=87 // pred_check_branch
          %574 = sbr.rel (%p572) target = $region100
        $region99: #{linear_model_forward.1} parent=87 // pred_region
          %575 = dma.done [#allocation5], 1024
        $region100: #{linear_model_forward.1} parent=87 // pred_fallthru
          _
        // Predicated region
        $region101: #{linear_model_forward.1} parent=87 // pred_check
          %p576 = pneg %p244
        $region102: #{linear_model_forward.1} parent=87 // pred_check_branch
          %578 = sbr.rel (%p576) target = $region104
        $region103: #{linear_model_forward.1} parent=87 // pred_region
          %579 = dma.done [#allocation8], 1024
        $region104: #{linear_model_forward.1} parent=87 // pred_fallthru
          _
        // Predicated region
        $region105: #{linear_model_forward.1} parent=87 // pred_check
          %p580 = pneg %p328
        $region106: #{linear_model_forward.1} parent=87 // pred_check_branch
          %582 = sbr.rel (%p580) target = $region108
        $region107: #{linear_model_forward.1} parent=87 // pred_region
          %583 = dma.done [#allocation8], 1024
        $region108: #{linear_model_forward.1} parent=87 // pred_fallthru
          _
        // Predicated region
        $region109: #{linear_model_forward.1} parent=87 // pred_check
          %p584 = pneg %p370
        $region110: #{linear_model_forward.1} parent=87 // pred_check_branch
          %586 = sbr.rel (%p584) target = $region112
        $region111: #{linear_model_forward.1} parent=87 // pred_region
          %587 = dma.done [#allocation11], 10240
        $region112: #{linear_model_forward.1} parent=87 // pred_fallthru
          _
        %s588 = sand.u32 %s42, 1
        %s589 = scalar_lea.sflag [#allocation3], %s588
        %s590 = sand.u32 %s42, 1
        %s591 = smul.addr %s590, 8
        %s592 = scalar_lea.vmem [#allocation2], %s591
        %p593 = pneg %p55
        %p594 = pneg %p52
        %p595 = pneg %p76
        %p596 = pneg %p73
        %p597 = pneg %p97
        %p598 = pneg %p94
        %p599 = pneg %p118
        %p600 = pneg %p115
        %p601 = pneg %p139
        %p602 = pneg %p136
        %p603 = pneg %p160
        %p604 = pneg %p157
        %p605 = pneg %p181
        %p606 = pneg %p178
        %p607 = pneg %p202
        %p608 = pneg %p199
        %p609 = pneg %p223
        %p610 = pneg %p220
        %p611 = pneg %p244
        %p612 = pneg %p241
        %p613 = pneg %p265
        %p614 = pneg %p262
        %p615 = pneg %p286
        %p616 = pneg %p283
        %p617 = pneg %p307
        %p618 = pneg %p304
        %p619 = pneg %p328
        %p620 = pneg %p325
        %p621 = pneg %p349
        %p622 = pneg %p346
        %p623 = pneg %p370
        %p624 = pneg %p367
        %p625 = pneg %p391
        %p626 = pneg %p388
        %p627 = pneg %p417
        %p628 = pneg %p414
        %p629 = scmp.lt.s32.totalorder %s34, 1
        %s630 = scalar_select %p629, %s34, 1
        %s631 = smul.addr %s630, 5
        %s632 = scalar_lea.vmem %s17, %s631
        %p633 = scmp.lt.s32.totalorder %s34, 1
        %s634 = scalar_select %p633, %s34, 1
        %s635 = smul.addr %s634, 5
        %s636 = scalar_lea.vmem %s17, %s635
        %v638 = vld [vmem:[%s563] sm:$0xff]
        %v639 = vpack.c.bf16 %v638, %v638
        %v640 = vld [vmem:[#allocation4] sm:$0xf]
        %v641 = vld [vmem:[#allocation4 + $0x4] sm:$0xf]
        %v642 = vld [vmem:[#allocation4 + $0x8] sm:$0xf]
        %v643 = vld [vmem:[#allocation4 + $0xc] sm:$0xf]
        %v644 = vld [vmem:[#allocation4 + $0x10] sm:$0xf]
        %v645 = vld [vmem:[#allocation4 + $0x14] sm:$0xf]
        %v646 = vld [vmem:[#allocation4 + $0x18] sm:$0xf]
        %v647 = vld [vmem:[#allocation4 + $0x1c] sm:$0xf]
        %v648 = vld [vmem:[%s2] sm:$0x1]
        %v650 = vlaneseq
        %v651 = vshrl.u32 %v650, 7
        %v652 = vsub.s32 0, %v651
        %v653 = vrot.slane %v648, %v652
        %v663 = vunpack.c.l.b16 %v640
        %v664 = vunpack.c.l.b16 %v641
        %v665 = vunpack.c.l.b16 %v642
        %v666 = vunpack.c.l.b16 %v643
        %v667 = vunpack.c.l.b16 %v644
        %v668 = vunpack.c.l.b16 %v645
        %v669 = vunpack.c.l.b16 %v646
        %v670 = vunpack.c.l.b16 %v647
        %v671 = vpack.c.b16 %v664, %v663
        %v672 = vpack.c.b16 %v666, %v665
        %v673 = vpack.c.b16 %v668, %v667
        %v674 = vpack.c.b16 %v670, %v669
        %vm679 = vcmask 523264
        %v681 = vsel %vm679, %v639, 0
        %683 = vmatprep.subr.bf16.mxu0 0
        %684 = vmatpush1.bf16.msra.mxu0 %v671
        %685 = vmatprep.subr.bf16.mxu0 0
        %686 = vmatpush1.bf16.msra.mxu0 %v672
        %687 = vmatprep.subr.bf16.mxu0 0
        %688 = vmatpush1.bf16.msra.mxu0 %v673
        %689 = vmatprep.subr.bf16.mxu0 0
        %690 = vmatpush1.bf16.msra.mxu0 %v674
        %691 = vmatprep.subr.bf16.mxu0 0
        %692 = vmatpush1.bf16.msra.mxu0 0
        %693 = vmatprep.subr.bf16.mxu0 0
        %694 = vmatpush1.bf16.msra.mxu0 0
        %695 = vmatprep.subr.bf16.mxu0 0
        %696 = vmatpush1.bf16.msra.mxu0 0
        %697 = vmatprep.subr.bf16.mxu0 0
        %698 = vmatpush1.bf16.msra.mxu0 0
        %699 = vmatprep.subr.bf16.mxu0 0
        %700 = vmatpush1.bf16.msra.mxu0 0
        %701 = vmatprep.subr.bf16.mxu0 0
        %702 = vmatpush1.bf16.msra.mxu0 0
        %703 = vmatprep.subr.bf16.mxu0 0
        %704 = vmatpush1.bf16.msra.mxu0 0
        %705 = vmatprep.subr.bf16.mxu0 0
        %706 = vmatpush1.bf16.msra.mxu0 0
        %707 = vmatprep.subr.bf16.mxu0 0
        %708 = vmatpush1.bf16.msra.mxu0 0
        %709 = vmatprep.subr.bf16.mxu0 0
        %710 = vmatpush1.bf16.msra.mxu0 0
        %711 = vmatprep.subr.bf16.mxu0 0
        %712 = vmatpush1.bf16.msra.mxu0 0
        %713 = vmatprep.subr.bf16.mxu0 0
        %714 = vmatpush1.bf16.msra.mxu0 0
        %715 = vmatprep.mubr.bf16.mxu0 0
        %716 = vmatmul.mubr.bf16.gmra.mrb[0].mxu0 %v681
        %v717 = vpop.f32.mrb[0].mxu0
        %v718 = vadd.f32 %v653, %v717
        %v719 = vpop.f32.mrb[0].mxu0
        %v720 = vpop.f32.mrb[0].mxu0
        %v721 = vpop.f32.mrb[0].mxu0
        %722 = vdwg.mxu0
        %v723 = vld [vmem:[%s3] sm:$0x1]
        %v724 = vld [vmem:[%s4] sm:$0x1]
        %725 = vadd.xlane.f32.xlu0 %v718
        %v726 = vpop.xlane.xlu0 %725
        %v727 = vrcp.pop 128.0
        %v728 = vmul.f32 %v726, %v727
        %v729 = vmul.f32 %v718, %v718
        %730 = vadd.xlane.f32.xlu0 %v729
        %v731 = vpop.xlane.xlu0 %730
        %v732 = vmul.f32 %v731, %v727
        %v733 = vmul.f32 %v728, %v728
        %v734 = vsub.f32 %v732, %v733
        %v735 = vsub.f32 %v718, %v728
        %v736 = vadd.f32 %v734, 1e-05
        %v737 = vrsqrt.pop %v736
        %v738 = vmul.f32 %v735, %v737
        %v740 = vlaneseq
        %v741 = vshrl.u32 %v740, 7
        %v742 = vsub.s32 0, %v741
        %v743 = vrot.slane %v723, %v742
        %v745 = vmul.f32 %v738, %v743
        %v747 = vlaneseq
        %v748 = vshrl.u32 %v747, 7
        %v749 = vsub.s32 0, %v748
        %v750 = vrot.slane %v724, %v749
        %v752 = vadd.f32 %v745, %v750
        %v753 = vpack.c.bf16 %v752, %v752
        %v754 = vld [vmem:[#allocation6] sm:$0xf]
        %v755 = vld [vmem:[#allocation6 + $0x4] sm:$0xf]
        %v756 = vld [vmem:[#allocation6 + $0x8] sm:$0xf]
        %v757 = vld [vmem:[#allocation6 + $0xc] sm:$0xf]
        %v758 = vld [vmem:[#allocation6 + $0x10] sm:$0xf]
        %v759 = vld [vmem:[#allocation6 + $0x14] sm:$0xf]
        %v760 = vld [vmem:[#allocation6 + $0x18] sm:$0xf]
        %v761 = vld [vmem:[#allocation6 + $0x1c] sm:$0xf]
        %v762 = vld [vmem:[#allocation6 + $0x20] sm:$0xf]
        %v763 = vld [vmem:[#allocation6 + $0x24] sm:$0xf]
        %v764 = vld [vmem:[#allocation6 + $0x28] sm:$0xf]
        %v765 = vld [vmem:[#allocation6 + $0x2c] sm:$0xf]
        %v766 = vld [vmem:[#allocation6 + $0x30] sm:$0xf]
        %v767 = vld [vmem:[#allocation6 + $0x34] sm:$0xf]
        %v768 = vld [vmem:[#allocation6 + $0x38] sm:$0xf]
        %v769 = vld [vmem:[#allocation6 + $0x3c] sm:$0xf]
        %v770 = vld [vmem:[%s6] sm:$0x1]
        %v772 = vlaneseq
        %v773 = vshrl.u32 %v772, 7
        %v774 = vsub.s32 0, %v773
        %v775 = vrot.slane %v770, %v774
        %v793 = vunpack.c.l.b16 %v754
        %v794 = vunpack.c.l.b16 %v755
        %v795 = vunpack.c.l.b16 %v756
        %v796 = vunpack.c.l.b16 %v757
        %v797 = vunpack.c.l.b16 %v758
        %v798 = vunpack.c.l.b16 %v759
        %v799 = vunpack.c.l.b16 %v760
        %v800 = vunpack.c.l.b16 %v761
        %v801 = vunpack.c.l.b16 %v762
        %v802 = vunpack.c.l.b16 %v763
        %v803 = vunpack.c.l.b16 %v764
        %v804 = vunpack.c.l.b16 %v765
        %v805 = vunpack.c.l.b16 %v766
        %v806 = vunpack.c.l.b16 %v767
        %v807 = vunpack.c.l.b16 %v768
        %v808 = vunpack.c.l.b16 %v769
        %v809 = vpack.c.b16 %v794, %v793
        %v810 = vpack.c.b16 %v796, %v795
        %v811 = vpack.c.b16 %v798, %v797
        %v812 = vpack.c.b16 %v800, %v799
        %v813 = vpack.c.b16 %v802, %v801
        %v814 = vpack.c.b16 %v804, %v803
        %v815 = vpack.c.b16 %v806, %v805
        %v816 = vpack.c.b16 %v808, %v807
        %825 = vmatprep.subr.bf16.mxu0 0
        %826 = vmatpush1.bf16.msra.mxu0 %v809
        %827 = vmatprep.subr.bf16.mxu0 0
        %828 = vmatpush1.bf16.msra.mxu0 %v810
        %829 = vmatprep.subr.bf16.mxu0 0
        %830 = vmatpush1.bf16.msra.mxu0 %v811
        %831 = vmatprep.subr.bf16.mxu0 0
        %832 = vmatpush1.bf16.msra.mxu0 %v812
        %833 = vmatprep.subr.bf16.mxu0 0
        %834 = vmatpush1.bf16.msra.mxu0 %v813
        %835 = vmatprep.subr.bf16.mxu0 0
        %836 = vmatpush1.bf16.msra.mxu0 %v814
        %837 = vmatprep.subr.bf16.mxu0 0
        %838 = vmatpush1.bf16.msra.mxu0 %v815
        %839 = vmatprep.subr.bf16.mxu0 0
        %840 = vmatpush1.bf16.msra.mxu0 %v816
        %841 = vmatprep.subr.bf16.mxu0 0
        %842 = vmatpush1.bf16.msra.mxu0 0
        %843 = vmatprep.subr.bf16.mxu0 0
        %844 = vmatpush1.bf16.msra.mxu0 0
        %845 = vmatprep.subr.bf16.mxu0 0
        %846 = vmatpush1.bf16.msra.mxu0 0
        %847 = vmatprep.subr.bf16.mxu0 0
        %848 = vmatpush1.bf16.msra.mxu0 0
        %849 = vmatprep.subr.bf16.mxu0 0
        %850 = vmatpush1.bf16.msra.mxu0 0
        %851 = vmatprep.subr.bf16.mxu0 0
        %852 = vmatpush1.bf16.msra.mxu0 0
        %853 = vmatprep.subr.bf16.mxu0 0
        %854 = vmatpush1.bf16.msra.mxu0 0
        %855 = vmatprep.subr.bf16.mxu0 0
        %856 = vmatpush1.bf16.msra.mxu0 0
        %857 = vmatprep.mubr.bf16.mxu0 0
        %858 = vmatmul.mubr.bf16.gmra.mrb[0].mxu0 %v753
        %v859 = vpop.f32.mrb[0].mxu0
        %v860 = vadd.f32 %v775, %v859
        %v861 = vpop.f32.mrb[0].mxu0
        %v862 = vpop.f32.mrb[0].mxu0
        %v863 = vpop.f32.mrb[0].mxu0
        %864 = vdwg.mxu0
        %v865 = vld [vmem:[%s7] sm:$0x1]
        %v866 = vld [vmem:[%s8] sm:$0x1]
        %867 = vadd.xlane.f32.xlu0 %v860
        %v868 = vpop.xlane.xlu0 %867
        %v869 = vmul.f32 %v868, %v727
        %v870 = vmul.f32 %v860, %v860
        %871 = vadd.xlane.f32.xlu0 %v870
        %v872 = vpop.xlane.xlu0 %871
        %v873 = vmul.f32 %v872, %v727
        %v874 = vmul.f32 %v869, %v869
        %v875 = vsub.f32 %v873, %v874
        %v876 = vsub.f32 %v860, %v869
        %v877 = vadd.f32 %v875, 1e-05
        %v878 = vrsqrt.pop %v877
        %v879 = vmul.f32 %v876, %v878
        %v881 = vlaneseq
        %v882 = vshrl.u32 %v881, 7
        %v883 = vsub.s32 0, %v882
        %v884 = vrot.slane %v865, %v883
        %v886 = vmul.f32 %v879, %v884
        %v888 = vlaneseq
        %v889 = vshrl.u32 %v888, 7
        %v890 = vsub.s32 0, %v889
        %v891 = vrot.slane %v866, %v890
        %v893 = vadd.f32 %v886, %v891
        %v894 = vpack.c.bf16 %v893, %v893
        %v895 = vld [vmem:[#allocation7] sm:$0xf]
        %v896 = vld [vmem:[#allocation7 + $0x4] sm:$0xf]
        %v897 = vld [vmem:[#allocation7 + $0x8] sm:$0xf]
        %v898 = vld [vmem:[#allocation7 + $0xc] sm:$0xf]
        %v899 = vld [vmem:[#allocation7 + $0x10] sm:$0xf]
        %v900 = vld [vmem:[#allocation7 + $0x14] sm:$0xf]
        %v901 = vld [vmem:[#allocation7 + $0x18] sm:$0xf]
        %v902 = vld [vmem:[#allocation7 + $0x1c] sm:$0xf]
        %v903 = vld [vmem:[#allocation7 + $0x20] sm:$0xf]
        %v904 = vld [vmem:[#allocation7 + $0x24] sm:$0xf]
        %v905 = vld [vmem:[#allocation7 + $0x28] sm:$0xf]
        %v906 = vld [vmem:[#allocation7 + $0x2c] sm:$0xf]
        %v907 = vld [vmem:[#allocation7 + $0x30] sm:$0xf]
        %v908 = vld [vmem:[#allocation7 + $0x34] sm:$0xf]
        %v909 = vld [vmem:[#allocation7 + $0x38] sm:$0xf]
        %v910 = vld [vmem:[#allocation7 + $0x3c] sm:$0xf]
        %v911 = vld [vmem:[%s10] sm:$0x1]
        %v913 = vlaneseq
        %v914 = vshrl.u32 %v913, 7
        %v915 = vsub.s32 0, %v914
        %v916 = vrot.slane %v911, %v915
        %v934 = vunpack.c.l.b16 %v895
        %v935 = vunpack.c.l.b16 %v896
        %v936 = vunpack.c.l.b16 %v897
        %v937 = vunpack.c.l.b16 %v898
        %v938 = vunpack.c.l.b16 %v899
        %v939 = vunpack.c.l.b16 %v900
        %v940 = vunpack.c.l.b16 %v901
        %v941 = vunpack.c.l.b16 %v902
        %v942 = vunpack.c.l.b16 %v903
        %v943 = vunpack.c.l.b16 %v904
        %v944 = vunpack.c.l.b16 %v905
        %v945 = vunpack.c.l.b16 %v906
        %v946 = vunpack.c.l.b16 %v907
        %v947 = vunpack.c.l.b16 %v908
        %v948 = vunpack.c.l.b16 %v909
        %v949 = vunpack.c.l.b16 %v910
        %v950 = vpack.c.b16 %v935, %v934
        %v951 = vpack.c.b16 %v937, %v936
        %v952 = vpack.c.b16 %v939, %v938
        %v953 = vpack.c.b16 %v941, %v940
        %v954 = vpack.c.b16 %v943, %v942
        %v955 = vpack.c.b16 %v945, %v944
        %v956 = vpack.c.b16 %v947, %v946
        %v957 = vpack.c.b16 %v949, %v948
        %966 = vmatprep.subr.bf16.mxu0 0
        %967 = vmatpush1.bf16.msra.mxu0 %v950
        %968 = vmatprep.subr.bf16.mxu0 0
        %969 = vmatpush1.bf16.msra.mxu0 %v951
        %970 = vmatprep.subr.bf16.mxu0 0
        %971 = vmatpush1.bf16.msra.mxu0 %v952
        %972 = vmatprep.subr.bf16.mxu0 0
        %973 = vmatpush1.bf16.msra.mxu0 %v953
        %974 = vmatprep.subr.bf16.mxu0 0
        %975 = vmatpush1.bf16.msra.mxu0 %v954
        %976 = vmatprep.subr.bf16.mxu0 0
        %977 = vmatpush1.bf16.msra.mxu0 %v955
        %978 = vmatprep.subr.bf16.mxu0 0
        %979 = vmatpush1.bf16.msra.mxu0 %v956
        %980 = vmatprep.subr.bf16.mxu0 0
        %981 = vmatpush1.bf16.msra.mxu0 %v957
        %982 = vmatprep.subr.bf16.mxu0 0
        %983 = vmatpush1.bf16.msra.mxu0 0
        %984 = vmatprep.subr.bf16.mxu0 0
        %985 = vmatpush1.bf16.msra.mxu0 0
        %986 = vmatprep.subr.bf16.mxu0 0
        %987 = vmatpush1.bf16.msra.mxu0 0
        %988 = vmatprep.subr.bf16.mxu0 0
        %989 = vmatpush1.bf16.msra.mxu0 0
        %990 = vmatprep.subr.bf16.mxu0 0
        %991 = vmatpush1.bf16.msra.mxu0 0
        %992 = vmatprep.subr.bf16.mxu0 0
        %993 = vmatpush1.bf16.msra.mxu0 0
        %994 = vmatprep.subr.bf16.mxu0 0
        %995 = vmatpush1.bf16.msra.mxu0 0
        %996 = vmatprep.subr.bf16.mxu0 0
        %997 = vmatpush1.bf16.msra.mxu0 0
        %998 = vmatprep.mubr.bf16.mxu0 0
        %999 = vmatmul.mubr.bf16.gmra.mrb[0].mxu0 %v894
        %v1000 = vpop.f32.mrb[0].mxu0
        %v1001 = vadd.f32 %v916, %v1000
        %v1002 = vpop.f32.mrb[0].mxu0
        %v1003 = vpop.f32.mrb[0].mxu0
        %v1004 = vpop.f32.mrb[0].mxu0
        %1005 = vdwg.mxu0
        %v1006 = vld [vmem:[%s11] sm:$0x1]
        %v1007 = vld [vmem:[%s12] sm:$0x1]
        %1008 = vadd.xlane.f32.xlu0 %v1001
        %v1009 = vpop.xlane.xlu0 %1008
        %v1010 = vmul.f32 %v1009, %v727
        %v1011 = vmul.f32 %v1001, %v1001
        %1012 = vadd.xlane.f32.xlu0 %v1011
        %v1013 = vpop.xlane.xlu0 %1012
        %v1014 = vmul.f32 %v1013, %v727
        %v1015 = vmul.f32 %v1010, %v1010
        %v1016 = vsub.f32 %v1014, %v1015
        %v1017 = vsub.f32 %v1001, %v1010
        %v1018 = vadd.f32 %v1016, 1e-05
        %v1019 = vrsqrt.pop %v1018
        %v1020 = vmul.f32 %v1017, %v1019
        %v1022 = vlaneseq
        %v1023 = vshrl.u32 %v1022, 7
        %v1024 = vsub.s32 0, %v1023
        %v1025 = vrot.slane %v1006, %v1024
        %v1027 = vmul.f32 %v1020, %v1025
        %v1029 = vlaneseq
        %v1030 = vshrl.u32 %v1029, 7
        %v1031 = vsub.s32 0, %v1030
        %v1032 = vrot.slane %v1007, %v1031
        %v1034 = vadd.f32 %v1027, %v1032
        %v1035 = vpack.c.bf16 %v1034, %v1034
        %v1036 = vld [vmem:[#allocation9] sm:$0xf]
        %v1037 = vld [vmem:[#allocation9 + $0x4] sm:$0xf]
        %v1038 = vld [vmem:[#allocation9 + $0x8] sm:$0xf]
        %v1039 = vld [vmem:[#allocation9 + $0xc] sm:$0xf]
        %v1040 = vld [vmem:[#allocation9 + $0x10] sm:$0xf]
        %v1041 = vld [vmem:[#allocation9 + $0x14] sm:$0xf]
        %v1042 = vld [vmem:[#allocation9 + $0x18] sm:$0xf]
        %v1043 = vld [vmem:[#allocation9 + $0x1c] sm:$0xf]
        %v1044 = vld [vmem:[#allocation9 + $0x20] sm:$0xf]
        %v1045 = vld [vmem:[#allocation9 + $0x24] sm:$0xf]
        %v1046 = vld [vmem:[#allocation9 + $0x28] sm:$0xf]
        %v1047 = vld [vmem:[#allocation9 + $0x2c] sm:$0xf]
        %v1048 = vld [vmem:[#allocation9 + $0x30] sm:$0xf]
        %v1049 = vld [vmem:[#allocation9 + $0x34] sm:$0xf]
        %v1050 = vld [vmem:[#allocation9 + $0x38] sm:$0xf]
        %v1051 = vld [vmem:[#allocation9 + $0x3c] sm:$0xf]
        %v1052 = vld [vmem:[%s14] sm:$0x1]
        %v1054 = vlaneseq
        %v1055 = vshrl.u32 %v1054, 7
        %v1056 = vsub.s32 0, %v1055
        %v1057 = vrot.slane %v1052, %v1056
        %v1075 = vunpack.c.l.b16 %v1036
        %v1076 = vunpack.c.l.b16 %v1037
        %v1077 = vunpack.c.l.b16 %v1038
        %v1078 = vunpack.c.l.b16 %v1039
        %v1079 = vunpack.c.l.b16 %v1040
        %v1080 = vunpack.c.l.b16 %v1041
        %v1081 = vunpack.c.l.b16 %v1042
        %v1082 = vunpack.c.l.b16 %v1043
        %v1083 = vunpack.c.l.b16 %v1044
        %v1084 = vunpack.c.l.b16 %v1045
        %v1085 = vunpack.c.l.b16 %v1046
        %v1086 = vunpack.c.l.b16 %v1047
        %v1087 = vunpack.c.l.b16 %v1048
        %v1088 = vunpack.c.l.b16 %v1049
        %v1089 = vunpack.c.l.b16 %v1050
        %v1090 = vunpack.c.l.b16 %v1051
        %v1091 = vpack.c.b16 %v1076, %v1075
        %v1092 = vpack.c.b16 %v1078, %v1077
        %v1093 = vpack.c.b16 %v1080, %v1079
        %v1094 = vpack.c.b16 %v1082, %v1081
        %v1095 = vpack.c.b16 %v1084, %v1083
        %v1096 = vpack.c.b16 %v1086, %v1085
        %v1097 = vpack.c.b16 %v1088, %v1087
        %v1098 = vpack.c.b16 %v1090, %v1089
        %1107 = vmatprep.subr.bf16.mxu0 0
        %1108 = vmatpush1.bf16.msra.mxu0 %v1091
        %1109 = vmatprep.subr.bf16.mxu0 0
        %1110 = vmatpush1.bf16.msra.mxu0 %v1092
        %1111 = vmatprep.subr.bf16.mxu0 0
        %1112 = vmatpush1.bf16.msra.mxu0 %v1093
        %1113 = vmatprep.subr.bf16.mxu0 0
        %1114 = vmatpush1.bf16.msra.mxu0 %v1094
        %1115 = vmatprep.subr.bf16.mxu0 0
        %1116 = vmatpush1.bf16.msra.mxu0 %v1095
        %1117 = vmatprep.subr.bf16.mxu0 0
        %1118 = vmatpush1.bf16.msra.mxu0 %v1096
        %1119 = vmatprep.subr.bf16.mxu0 0
        %1120 = vmatpush1.bf16.msra.mxu0 %v1097
        %1121 = vmatprep.subr.bf16.mxu0 0
        %1122 = vmatpush1.bf16.msra.mxu0 %v1098
        %1123 = vmatprep.subr.bf16.mxu0 0
        %1124 = vmatpush1.bf16.msra.mxu0 0
        %1125 = vmatprep.subr.bf16.mxu0 0
        %1126 = vmatpush1.bf16.msra.mxu0 0
        %1127 = vmatprep.subr.bf16.mxu0 0
        %1128 = vmatpush1.bf16.msra.mxu0 0
        %1129 = vmatprep.subr.bf16.mxu0 0
        %1130 = vmatpush1.bf16.msra.mxu0 0
        %1131 = vmatprep.subr.bf16.mxu0 0
        %1132 = vmatpush1.bf16.msra.mxu0 0
        %1133 = vmatprep.subr.bf16.mxu0 0
        %1134 = vmatpush1.bf16.msra.mxu0 0
        %1135 = vmatprep.subr.bf16.mxu0 0
        %1136 = vmatpush1.bf16.msra.mxu0 0
        %1137 = vmatprep.subr.bf16.mxu0 0
        %1138 = vmatpush1.bf16.msra.mxu0 0
        %1139 = vmatprep.mubr.bf16.mxu0 0
        %1140 = vmatmul.mubr.bf16.gmra.mrb[0].mxu0 %v1035
        %v1141 = vpop.f32.mrb[0].mxu0
        %v1142 = vadd.f32 %v1057, %v1141
        %v1143 = vpop.f32.mrb[0].mxu0
        %v1144 = vpop.f32.mrb[0].mxu0
        %v1145 = vpop.f32.mrb[0].mxu0
        %1146 = vdwg.mxu0
        %v1147 = vpack.c.bf16 %v1142, %v1142
        %v1148 = vld [vmem:[#allocation10] sm:$0xff]
        %v1149 = vld [vmem:[#allocation10 + $0x8] sm:$0xff]
        %v1150 = vld [vmem:[#allocation10 + $0x10] sm:$0xf]
        %v1151 = vld [vmem:[#allocation10 + $0x28] sm:$0xff]
        %v1152 = vld [vmem:[#allocation10 + $0x30] sm:$0xff]
        %v1153 = vld [vmem:[#allocation10 + $0x38] sm:$0xf]
        %v1154 = vld [vmem:[#allocation10 + $0x50] sm:$0xff]
        %v1155 = vld [vmem:[#allocation10 + $0x58] sm:$0xff]
        %v1156 = vld [vmem:[#allocation10 + $0x60] sm:$0xf]
        %v1157 = vld [vmem:[#allocation10 + $0x78] sm:$0xff]
        %v1158 = vld [vmem:[#allocation10 + $0x80] sm:$0xff]
        %v1159 = vld [vmem:[#allocation10 + $0x88] sm:$0xf]
        %v1160 = vld [vmem:[#allocation10 + $0xa0] sm:$0xff]
        %v1161 = vld [vmem:[#allocation10 + $0xa8] sm:$0xff]
        %v1162 = vld [vmem:[#allocation10 + $0xb0] sm:$0xf]
        %v1163 = vld [vmem:[#allocation10 + $0xc8] sm:$0xff]
        %v1164 = vld [vmem:[#allocation10 + $0xd0] sm:$0xff]
        %v1165 = vld [vmem:[#allocation10 + $0xd8] sm:$0xf]
        %v1166 = vld [vmem:[#allocation10 + $0xf0] sm:$0xff]
        %v1167 = vld [vmem:[#allocation10 + $0xf8] sm:$0xff]
        %v1168 = vld [vmem:[#allocation10 + $0x100] sm:$0xf]
        %v1169 = vld [vmem:[#allocation10 + $0x118] sm:$0xff]
        %v1170 = vld [vmem:[#allocation10 + $0x120] sm:$0xff]
        %v1171 = vld [vmem:[#allocation10 + $0x128] sm:$0xf]
        %v1172 = vld [vmem:[#allocation10 + $0x140] sm:$0xff]
        %v1173 = vld [vmem:[#allocation10 + $0x148] sm:$0xff]
        %v1174 = vld [vmem:[#allocation10 + $0x150] sm:$0xf]
        %v1175 = vld [vmem:[#allocation10 + $0x168] sm:$0xff]
        %v1176 = vld [vmem:[#allocation10 + $0x170] sm:$0xff]
        %v1177 = vld [vmem:[#allocation10 + $0x178] sm:$0xf]
        %v1178 = vld [vmem:[#allocation10 + $0x190] sm:$0xff]
        %v1179 = vld [vmem:[#allocation10 + $0x198] sm:$0xff]
        %v1180 = vld [vmem:[#allocation10 + $0x1a0] sm:$0xf]
        %v1181 = vld [vmem:[#allocation10 + $0x1b8] sm:$0xff]
        %v1182 = vld [vmem:[#allocation10 + $0x1c0] sm:$0xff]
        %v1183 = vld [vmem:[#allocation10 + $0x1c8] sm:$0xf]
        %v1184 = vld [vmem:[#allocation10 + $0x1e0] sm:$0xff]
        %v1185 = vld [vmem:[#allocation10 + $0x1e8] sm:$0xff]
        %v1186 = vld [vmem:[#allocation10 + $0x1f0] sm:$0xf]
        %v1187 = vld [vmem:[#allocation10 + $0x208] sm:$0xff]
        %v1188 = vld [vmem:[#allocation10 + $0x210] sm:$0xff]
        %v1189 = vld [vmem:[#allocation10 + $0x218] sm:$0xf]
        %v1190 = vld [vmem:[#allocation10 + $0x230] sm:$0xff]
        %v1191 = vld [vmem:[#allocation10 + $0x238] sm:$0xff]
        %v1192 = vld [vmem:[#allocation10 + $0x240] sm:$0xf]
        %v1193 = vld [vmem:[#allocation10 + $0x258] sm:$0xff]
        %v1194 = vld [vmem:[#allocation10 + $0x260] sm:$0xff]
        %v1195 = vld [vmem:[#allocation10 + $0x268] sm:$0xf]
        %v1196 = vld [vmem:[%s16] sm:$0x1f]
        %v1198 = vlaneseq
        %v1199 = vshrl.u32 %v1198, 7
        %v1200 = vsub.s32 0, %v1199
        %v1201 = vrot.slane %v1196, %v1200
        %v1202 = vlaneseq
        %v1203 = vshrl.u32 %v1202, 7
        %v1204 = vsub.s32 1, %v1203
        %v1205 = vrot.slane %v1196, %v1204
        %v1206 = vlaneseq
        %v1207 = vshrl.u32 %v1206, 7
        %v1208 = vsub.s32 2, %v1207
        %v1209 = vrot.slane %v1196, %v1208
        %v1210 = vlaneseq
        %v1211 = vshrl.u32 %v1210, 7
        %v1212 = vsub.s32 3, %v1211
        %v1213 = vrot.slane %v1196, %v1212
        %v1214 = vlaneseq
        %v1215 = vshrl.u32 %v1214, 7
        %v1216 = vsub.s32 4, %v1215
        %v1217 = vrot.slane %v1196, %v1216
        %v1271 = vunpack.c.l.b16 %v1148
        %v1272 = vunpack.c.h.b16 %v1148
        %v1273 = vunpack.c.l.b16 %v1149
        %v1274 = vunpack.c.h.b16 %v1149
        %v1275 = vunpack.c.l.b16 %v1150
        %v1276 = vunpack.c.l.b16 %v1151
        %v1277 = vunpack.c.h.b16 %v1151
        %v1278 = vunpack.c.l.b16 %v1152
        %v1279 = vunpack.c.h.b16 %v1152
        %v1280 = vunpack.c.l.b16 %v1153
        %v1281 = vunpack.c.l.b16 %v1154
        %v1282 = vunpack.c.h.b16 %v1154
        %v1283 = vunpack.c.l.b16 %v1155
        %v1284 = vunpack.c.h.b16 %v1155
        %v1285 = vunpack.c.l.b16 %v1156
        %v1286 = vunpack.c.l.b16 %v1157
        %v1287 = vunpack.c.h.b16 %v1157
        %v1288 = vunpack.c.l.b16 %v1158
        %v1289 = vunpack.c.h.b16 %v1158
        %v1290 = vunpack.c.l.b16 %v1159
        %v1291 = vunpack.c.l.b16 %v1160
        %v1292 = vunpack.c.h.b16 %v1160
        %v1293 = vunpack.c.l.b16 %v1161
        %v1294 = vunpack.c.h.b16 %v1161
        %v1295 = vunpack.c.l.b16 %v1162
        %v1296 = vunpack.c.l.b16 %v1163
        %v1297 = vunpack.c.h.b16 %v1163
        %v1298 = vunpack.c.l.b16 %v1164
        %v1299 = vunpack.c.h.b16 %v1164
        %v1300 = vunpack.c.l.b16 %v1165
        %v1301 = vunpack.c.l.b16 %v1166
        %v1302 = vunpack.c.h.b16 %v1166
        %v1303 = vunpack.c.l.b16 %v1167
        %v1304 = vunpack.c.h.b16 %v1167
        %v1305 = vunpack.c.l.b16 %v1168
        %v1306 = vunpack.c.l.b16 %v1169
        %v1307 = vunpack.c.h.b16 %v1169
        %v1308 = vunpack.c.l.b16 %v1170
        %v1309 = vunpack.c.h.b16 %v1170
        %v1310 = vunpack.c.l.b16 %v1171
        %v1311 = vunpack.c.l.b16 %v1172
        %v1312 = vunpack.c.h.b16 %v1172
        %v1313 = vunpack.c.l.b16 %v1173
        %v1314 = vunpack.c.h.b16 %v1173
        %v1315 = vunpack.c.l.b16 %v1174
        %v1316 = vunpack.c.l.b16 %v1175
        %v1317 = vunpack.c.h.b16 %v1175
        %v1318 = vunpack.c.l.b16 %v1176
        %v1319 = vunpack.c.h.b16 %v1176
        %v1320 = vunpack.c.l.b16 %v1177
        %v1321 = vunpack.c.l.b16 %v1178
        %v1322 = vunpack.c.h.b16 %v1178
        %v1323 = vunpack.c.l.b16 %v1179
        %v1324 = vunpack.c.h.b16 %v1179
        %v1325 = vunpack.c.l.b16 %v1180
        %v1326 = vunpack.c.l.b16 %v1181
        %v1327 = vunpack.c.h.b16 %v1181
        %v1328 = vunpack.c.l.b16 %v1182
        %v1329 = vunpack.c.h.b16 %v1182
        %v1330 = vunpack.c.l.b16 %v1183
        %v1331 = vunpack.c.l.b16 %v1184
        %v1332 = vunpack.c.h.b16 %v1184
        %v1333 = vunpack.c.l.b16 %v1185
        %v1334 = vunpack.c.h.b16 %v1185
        %v1335 = vunpack.c.l.b16 %v1186
        %v1336 = vunpack.c.l.b16 %v1187
        %v1337 = vunpack.c.h.b16 %v1187
        %v1338 = vunpack.c.l.b16 %v1188
        %v1339 = vunpack.c.h.b16 %v1188
        %v1340 = vunpack.c.l.b16 %v1189
        %v1341 = vunpack.c.l.b16 %v1190
        %v1342 = vunpack.c.h.b16 %v1190
        %v1343 = vunpack.c.l.b16 %v1191
        %v1344 = vunpack.c.h.b16 %v1191
        %v1345 = vunpack.c.l.b16 %v1192
        %v1346 = vunpack.c.l.b16 %v1193
        %v1347 = vunpack.c.h.b16 %v1193
        %v1348 = vunpack.c.l.b16 %v1194
        %v1349 = vunpack.c.h.b16 %v1194
        %v1350 = vunpack.c.l.b16 %v1195
        %v1351 = vpack.c.b16 %v1276, %v1271
        %v1352 = vpack.c.b16 %v1277, %v1272
        %v1353 = vpack.c.b16 %v1278, %v1273
        %v1354 = vpack.c.b16 %v1279, %v1274
        %v1355 = vpack.c.b16 %v1280, %v1275
        %v1356 = vpack.c.b16 %v1286, %v1281
        %v1357 = vpack.c.b16 %v1287, %v1282
        %v1358 = vpack.c.b16 %v1288, %v1283
        %v1359 = vpack.c.b16 %v1289, %v1284
        %v1360 = vpack.c.b16 %v1290, %v1285
        %v1361 = vpack.c.b16 %v1296, %v1291
        %v1362 = vpack.c.b16 %v1297, %v1292
        %v1363 = vpack.c.b16 %v1298, %v1293
        %v1364 = vpack.c.b16 %v1299, %v1294
        %v1365 = vpack.c.b16 %v1300, %v1295
        %v1366 = vpack.c.b16 %v1306, %v1301
        %v1367 = vpack.c.b16 %v1307, %v1302
        %v1368 = vpack.c.b16 %v1308, %v1303
        %v1369 = vpack.c.b16 %v1309, %v1304
        %v1370 = vpack.c.b16 %v1310, %v1305
        %v1371 = vpack.c.b16 %v1316, %v1311
        %v1372 = vpack.c.b16 %v1317, %v1312
        %v1373 = vpack.c.b16 %v1318, %v1313
        %v1374 = vpack.c.b16 %v1319, %v1314
        %v1375 = vpack.c.b16 %v1320, %v1315
        %v1376 = vpack.c.b16 %v1326, %v1321
        %v1377 = vpack.c.b16 %v1327, %v1322
        %v1378 = vpack.c.b16 %v1328, %v1323
        %v1379 = vpack.c.b16 %v1329, %v1324
        %v1380 = vpack.c.b16 %v1330, %v1325
        %v1381 = vpack.c.b16 %v1336, %v1331
        %v1382 = vpack.c.b16 %v1337, %v1332
        %v1383 = vpack.c.b16 %v1338, %v1333
        %v1384 = vpack.c.b16 %v1339, %v1334
        %v1385 = vpack.c.b16 %v1340, %v1335
        %v1386 = vpack.c.b16 %v1346, %v1341
        %v1387 = vpack.c.b16 %v1347, %v1342
        %v1388 = vpack.c.b16 %v1348, %v1343
        %v1389 = vpack.c.b16 %v1349, %v1344
        %v1390 = vpack.c.b16 %v1350, %v1345
        %1431 = vmatprep.subr.bf16.mxu0 %v1352
        %1432 = vmatpush1.bf16.msra.mxu0 %v1351
        %1433 = vmatprep.subr.bf16.mxu0 %v1357
        %1434 = vmatpush1.bf16.msra.mxu0 %v1356
        %1435 = vmatprep.subr.bf16.mxu0 %v1362
        %1436 = vmatpush1.bf16.msra.mxu0 %v1361
        %1437 = vmatprep.subr.bf16.mxu0 %v1367
        %1438 = vmatpush1.bf16.msra.mxu0 %v1366
        %1439 = vmatprep.subr.bf16.mxu0 %v1372
        %1440 = vmatpush1.bf16.msra.mxu0 %v1371
        %1441 = vmatprep.subr.bf16.mxu0 %v1377
        %1442 = vmatpush1.bf16.msra.mxu0 %v1376
        %1443 = vmatprep.subr.bf16.mxu0 %v1382
        %1444 = vmatpush1.bf16.msra.mxu0 %v1381
        %1445 = vmatprep.subr.bf16.mxu0 %v1387
        %1446 = vmatpush1.bf16.msra.mxu0 %v1386
        %1447 = vmatprep.subr.bf16.mxu0 0
        %1448 = vmatpush1.bf16.msra.mxu0 0
        %1449 = vmatprep.subr.bf16.mxu0 0
        %1450 = vmatpush1.bf16.msra.mxu0 0
        %1451 = vmatprep.subr.bf16.mxu0 0
        %1452 = vmatpush1.bf16.msra.mxu0 0
        %1453 = vmatprep.subr.bf16.mxu0 0
        %1454 = vmatpush1.bf16.msra.mxu0 0
        %1455 = vmatprep.subr.bf16.mxu0 0
        %1456 = vmatpush1.bf16.msra.mxu0 0
        %1457 = vmatprep.subr.bf16.mxu0 0
        %1458 = vmatpush1.bf16.msra.mxu0 0
        %1459 = vmatprep.subr.bf16.mxu0 0
        %1460 = vmatpush1.bf16.msra.mxu0 0
        %1461 = vmatprep.subr.bf16.mxu0 0
        %1462 = vmatpush1.bf16.msra.mxu0 0
        %1463 = vmatprep.mubr.bf16.mxu0 0
        %1464 = vmatmul.mubr.bf16.gmra.mrb[0].mxu0 %v1147
        %v1465 = vpop.f32.mrb[0].mxu0
        %v1466 = vadd.f32 %v1201, %v1465
        %v1467 = vpop.f32.mrb[0].mxu0
        %v1468 = vadd.f32 %v1205, %v1467
        %v1469 = vpop.f32.mrb[0].mxu0
        %v1470 = vpop.f32.mrb[0].mxu0
        %1471 = vdwg.mxu0
        %1472 = vmatprep.subr.bf16.mxu0 %v1354
        %1473 = vmatpush1.bf16.msra.mxu0 %v1353
        %1474 = vmatprep.subr.bf16.mxu0 %v1359
        %1475 = vmatpush1.bf16.msra.mxu0 %v1358
        %1476 = vmatprep.subr.bf16.mxu0 %v1364
        %1477 = vmatpush1.bf16.msra.mxu0 %v1363
        %1478 = vmatprep.subr.bf16.mxu0 %v1369
        %1479 = vmatpush1.bf16.msra.mxu0 %v1368
        %1480 = vmatprep.subr.bf16.mxu0 %v1374
        %1481 = vmatpush1.bf16.msra.mxu0 %v1373
        %1482 = vmatprep.subr.bf16.mxu0 %v1379
        %1483 = vmatpush1.bf16.msra.mxu0 %v1378
        %1484 = vmatprep.subr.bf16.mxu0 %v1384
        %1485 = vmatpush1.bf16.msra.mxu0 %v1383
        %1486 = vmatprep.subr.bf16.mxu0 %v1389
        %1487 = vmatpush1.bf16.msra.mxu0 %v1388
        %1488 = vmatprep.subr.bf16.mxu0 0
        %1489 = vmatpush1.bf16.msra.mxu0 0
        %1490 = vmatprep.subr.bf16.mxu0 0
        %1491 = vmatpush1.bf16.msra.mxu0 0
        %1492 = vmatprep.subr.bf16.mxu0 0
        %1493 = vmatpush1.bf16.msra.mxu0 0
        %1494 = vmatprep.subr.bf16.mxu0 0
        %1495 = vmatpush1.bf16.msra.mxu0 0
        %1496 = vmatprep.subr.bf16.mxu0 0
        %1497 = vmatpush1.bf16.msra.mxu0 0
        %1498 = vmatprep.subr.bf16.mxu0 0
        %1499 = vmatpush1.bf16.msra.mxu0 0
        %1500 = vmatprep.subr.bf16.mxu0 0
        %1501 = vmatpush1.bf16.msra.mxu0 0
        %1502 = vmatprep.subr.bf16.mxu0 0
        %1503 = vmatpush1.bf16.msra.mxu0 0
        %1504 = vmatprep.mubr.bf16.mxu0 0
        %1505 = vmatmul.mubr.bf16.gmra.mrb[0].mxu0 %v1147
        %v1506 = vpop.f32.mrb[0].mxu0
        %v1507 = vadd.f32 %v1209, %v1506
        %v1508 = vpop.f32.mrb[0].mxu0
        %v1509 = vadd.f32 %v1213, %v1508
        %v1510 = vpop.f32.mrb[0].mxu0
        %v1511 = vpop.f32.mrb[0].mxu0
        %1512 = vdwg.mxu0
        %1513 = vmatprep.subr.bf16.mxu0 0
        %1514 = vmatpush1.bf16.msra.mxu0 %v1355
        %1515 = vmatprep.subr.bf16.mxu0 0
        %1516 = vmatpush1.bf16.msra.mxu0 %v1360
        %1517 = vmatprep.subr.bf16.mxu0 0
        %1518 = vmatpush1.bf16.msra.mxu0 %v1365
        %1519 = vmatprep.subr.bf16.mxu0 0
        %1520 = vmatpush1.bf16.msra.mxu0 %v1370
        %1521 = vmatprep.subr.bf16.mxu0 0
        %1522 = vmatpush1.bf16.msra.mxu0 %v1375
        %1523 = vmatprep.subr.bf16.mxu0 0
        %1524 = vmatpush1.bf16.msra.mxu0 %v1380
        %1525 = vmatprep.subr.bf16.mxu0 0
        %1526 = vmatpush1.bf16.msra.mxu0 %v1385
        %1527 = vmatprep.subr.bf16.mxu0 0
        %1528 = vmatpush1.bf16.msra.mxu0 %v1390
        %1529 = vmatprep.subr.bf16.mxu0 0
        %1530 = vmatpush1.bf16.msra.mxu0 0
        %1531 = vmatprep.subr.bf16.mxu0 0
        %1532 = vmatpush1.bf16.msra.mxu0 0
        %1533 = vmatprep.subr.bf16.mxu0 0
        %1534 = vmatpush1.bf16.msra.mxu0 0
        %1535 = vmatprep.subr.bf16.mxu0 0
        %1536 = vmatpush1.bf16.msra.mxu0 0
        %1537 = vmatprep.subr.bf16.mxu0 0
        %1538 = vmatpush1.bf16.msra.mxu0 0
        %1539 = vmatprep.subr.bf16.mxu0 0
        %1540 = vmatpush1.bf16.msra.mxu0 0
        %1541 = vmatprep.subr.bf16.mxu0 0
        %1542 = vmatpush1.bf16.msra.mxu0 0
        %1543 = vmatprep.subr.bf16.mxu0 0
        %1544 = vmatpush1.bf16.msra.mxu0 0
        %1545 = vmatprep.mubr.bf16.mxu0 0
        %1546 = vmatmul.mubr.bf16.gmra.mrb[0].mxu0 %v1147
        %v1547 = vpop.f32.mrb[0].mxu0
        %v1548 = vadd.f32 %v1217, %v1547
        %v1549 = vpop.f32.mrb[0].mxu0
        %v1550 = vpop.f32.mrb[0].mxu0
        %v1551 = vpop.f32.mrb[0].mxu0
        %1552 = vdwg.mxu0
        %v1553 = vld [vmem:[#allocation10 + $0x14] sm:$0xff]
        %v1554 = vld [vmem:[#allocation10 + $0x1c] sm:$0xff]
        %v1555 = vld [vmem:[#allocation10 + $0x24] sm:$0xf]
        %v1556 = vld [vmem:[#allocation10 + $0x3c] sm:$0xff]
        %v1557 = vld [vmem:[#allocation10 + $0x44] sm:$0xff]
        %v1558 = vld [vmem:[#allocation10 + $0x4c] sm:$0xf]
        %v1559 = vld [vmem:[#allocation10 + $0x64] sm:$0xff]
        %v1560 = vld [vmem:[#allocation10 + $0x6c] sm:$0xff]
        %v1561 = vld [vmem:[#allocation10 + $0x74] sm:$0xf]
        %v1562 = vld [vmem:[#allocation10 + $0x8c] sm:$0xff]
        %v1563 = vld [vmem:[#allocation10 + $0x94] sm:$0xff]
        %v1564 = vld [vmem:[#allocation10 + $0x9c] sm:$0xf]
        %v1565 = vld [vmem:[#allocation10 + $0xb4] sm:$0xff]
        %v1566 = vld [vmem:[#allocation10 + $0xbc] sm:$0xff]
        %v1567 = vld [vmem:[#allocation10 + $0xc4] sm:$0xf]
        %v1568 = vld [vmem:[#allocation10 + $0xdc] sm:$0xff]
        %v1569 = vld [vmem:[#allocation10 + $0xe4] sm:$0xff]
        %v1570 = vld [vmem:[#allocation10 + $0xec] sm:$0xf]
        %v1571 = vld [vmem:[#allocation10 + $0x104] sm:$0xff]
        %v1572 = vld [vmem:[#allocation10 + $0x10c] sm:$0xff]
        %v1573 = vld [vmem:[#allocation10 + $0x114] sm:$0xf]
        %v1574 = vld [vmem:[#allocation10 + $0x12c] sm:$0xff]
        %v1575 = vld [vmem:[#allocation10 + $0x134] sm:$0xff]
        %v1576 = vld [vmem:[#allocation10 + $0x13c] sm:$0xf]
        %v1577 = vld [vmem:[#allocation10 + $0x154] sm:$0xff]
        %v1578 = vld [vmem:[#allocation10 + $0x15c] sm:$0xff]
        %v1579 = vld [vmem:[#allocation10 + $0x164] sm:$0xf]
        %v1580 = vld [vmem:[#allocation10 + $0x17c] sm:$0xff]
        %v1581 = vld [vmem:[#allocation10 + $0x184] sm:$0xff]
        %v1582 = vld [vmem:[#allocation10 + $0x18c] sm:$0xf]
        %v1583 = vld [vmem:[#allocation10 + $0x1a4] sm:$0xff]
        %v1584 = vld [vmem:[#allocation10 + $0x1ac] sm:$0xff]
        %v1585 = vld [vmem:[#allocation10 + $0x1b4] sm:$0xf]
        %v1586 = vld [vmem:[#allocation10 + $0x1cc] sm:$0xff]
        %v1587 = vld [vmem:[#allocation10 + $0x1d4] sm:$0xff]
        %v1588 = vld [vmem:[#allocation10 + $0x1dc] sm:$0xf]
        %v1589 = vld [vmem:[#allocation10 + $0x1f4] sm:$0xff]
        %v1590 = vld [vmem:[#allocation10 + $0x1fc] sm:$0xff]
        %v1591 = vld [vmem:[#allocation10 + $0x204] sm:$0xf]
        %v1592 = vld [vmem:[#allocation10 + $0x21c] sm:$0xff]
        %v1593 = vld [vmem:[#allocation10 + $0x224] sm:$0xff]
        %v1594 = vld [vmem:[#allocation10 + $0x22c] sm:$0xf]
        %v1595 = vld [vmem:[#allocation10 + $0x244] sm:$0xff]
        %v1596 = vld [vmem:[#allocation10 + $0x24c] sm:$0xff]
        %v1597 = vld [vmem:[#allocation10 + $0x254] sm:$0xf]
        %v1598 = vld [vmem:[#allocation10 + $0x26c] sm:$0xff]
        %v1599 = vld [vmem:[#allocation10 + $0x274] sm:$0xff]
        %v1600 = vld [vmem:[#allocation10 + $0x27c] sm:$0xf]
        %v1601 = vld [vmem:[%s16 + $0x5] sm:$0x1f]
        %v1603 = vlaneseq
        %v1604 = vshrl.u32 %v1603, 7
        %v1605 = vsub.s32 0, %v1604
        %v1606 = vrot.slane %v1601, %v1605
        %v1607 = vlaneseq
        %v1608 = vshrl.u32 %v1607, 7
        %v1609 = vsub.s32 1, %v1608
        %v1610 = vrot.slane %v1601, %v1609
        %v1611 = vlaneseq
        %v1612 = vshrl.u32 %v1611, 7
        %v1613 = vsub.s32 2, %v1612
        %v1614 = vrot.slane %v1601, %v1613
        %v1615 = vlaneseq
        %v1616 = vshrl.u32 %v1615, 7
        %v1617 = vsub.s32 3, %v1616
        %v1618 = vrot.slane %v1601, %v1617
        %v1619 = vlaneseq
        %v1620 = vshrl.u32 %v1619, 7
        %v1621 = vsub.s32 4, %v1620
        %v1622 = vrot.slane %v1601, %v1621
        %v1676 = vunpack.c.l.b16 %v1553
        %v1677 = vunpack.c.h.b16 %v1553
        %v1678 = vunpack.c.l.b16 %v1554
        %v1679 = vunpack.c.h.b16 %v1554
        %v1680 = vunpack.c.l.b16 %v1555
        %v1681 = vunpack.c.l.b16 %v1556
        %v1682 = vunpack.c.h.b16 %v1556
        %v1683 = vunpack.c.l.b16 %v1557
        %v1684 = vunpack.c.h.b16 %v1557
        %v1685 = vunpack.c.l.b16 %v1558
        %v1686 = vunpack.c.l.b16 %v1559
        %v1687 = vunpack.c.h.b16 %v1559
        %v1688 = vunpack.c.l.b16 %v1560
        %v1689 = vunpack.c.h.b16 %v1560
        %v1690 = vunpack.c.l.b16 %v1561
        %v1691 = vunpack.c.l.b16 %v1562
        %v1692 = vunpack.c.h.b16 %v1562
        %v1693 = vunpack.c.l.b16 %v1563
        %v1694 = vunpack.c.h.b16 %v1563
        %v1695 = vunpack.c.l.b16 %v1564
        %v1696 = vunpack.c.l.b16 %v1565
        %v1697 = vunpack.c.h.b16 %v1565
        %v1698 = vunpack.c.l.b16 %v1566
        %v1699 = vunpack.c.h.b16 %v1566
        %v1700 = vunpack.c.l.b16 %v1567
        %v1701 = vunpack.c.l.b16 %v1568
        %v1702 = vunpack.c.h.b16 %v1568
        %v1703 = vunpack.c.l.b16 %v1569
        %v1704 = vunpack.c.h.b16 %v1569
        %v1705 = vunpack.c.l.b16 %v1570
        %v1706 = vunpack.c.l.b16 %v1571
        %v1707 = vunpack.c.h.b16 %v1571
        %v1708 = vunpack.c.l.b16 %v1572
        %v1709 = vunpack.c.h.b16 %v1572
        %v1710 = vunpack.c.l.b16 %v1573
        %v1711 = vunpack.c.l.b16 %v1574
        %v1712 = vunpack.c.h.b16 %v1574
        %v1713 = vunpack.c.l.b16 %v1575
        %v1714 = vunpack.c.h.b16 %v1575
        %v1715 = vunpack.c.l.b16 %v1576
        %v1716 = vunpack.c.l.b16 %v1577
        %v1717 = vunpack.c.h.b16 %v1577
        %v1718 = vunpack.c.l.b16 %v1578
        %v1719 = vunpack.c.h.b16 %v1578
        %v1720 = vunpack.c.l.b16 %v1579
        %v1721 = vunpack.c.l.b16 %v1580
        %v1722 = vunpack.c.h.b16 %v1580
        %v1723 = vunpack.c.l.b16 %v1581
        %v1724 = vunpack.c.h.b16 %v1581
        %v1725 = vunpack.c.l.b16 %v1582
        %v1726 = vunpack.c.l.b16 %v1583
        %v1727 = vunpack.c.h.b16 %v1583
        %v1728 = vunpack.c.l.b16 %v1584
        %v1729 = vunpack.c.h.b16 %v1584
        %v1730 = vunpack.c.l.b16 %v1585
        %v1731 = vunpack.c.l.b16 %v1586
        %v1732 = vunpack.c.h.b16 %v1586
        %v1733 = vunpack.c.l.b16 %v1587
        %v1734 = vunpack.c.h.b16 %v1587
        %v1735 = vunpack.c.l.b16 %v1588
        %v1736 = vunpack.c.l.b16 %v1589
        %v1737 = vunpack.c.h.b16 %v1589
        %v1738 = vunpack.c.l.b16 %v1590
        %v1739 = vunpack.c.h.b16 %v1590
        %v1740 = vunpack.c.l.b16 %v1591
        %v1741 = vunpack.c.l.b16 %v1592
        %v1742 = vunpack.c.h.b16 %v1592
        %v1743 = vunpack.c.l.b16 %v1593
        %v1744 = vunpack.c.h.b16 %v1593
        %v1745 = vunpack.c.l.b16 %v1594
        %v1746 = vunpack.c.l.b16 %v1595
        %v1747 = vunpack.c.h.b16 %v1595
        %v1748 = vunpack.c.l.b16 %v1596
        %v1749 = vunpack.c.h.b16 %v1596
        %v1750 = vunpack.c.l.b16 %v1597
        %v1751 = vunpack.c.l.b16 %v1598
        %v1752 = vunpack.c.h.b16 %v1598
        %v1753 = vunpack.c.l.b16 %v1599
        %v1754 = vunpack.c.h.b16 %v1599
        %v1755 = vunpack.c.l.b16 %v1600
        %v1756 = vpack.c.b16 %v1681, %v1676
        %v1757 = vpack.c.b16 %v1682, %v1677
        %v1758 = vpack.c.b16 %v1683, %v1678
        %v1759 = vpack.c.b16 %v1684, %v1679
        %v1760 = vpack.c.b16 %v1685, %v1680
        %v1761 = vpack.c.b16 %v1691, %v1686
        %v1762 = vpack.c.b16 %v1692, %v1687
        %v1763 = vpack.c.b16 %v1693, %v1688
        %v1764 = vpack.c.b16 %v1694, %v1689
        %v1765 = vpack.c.b16 %v1695, %v1690
        %v1766 = vpack.c.b16 %v1701, %v1696
        %v1767 = vpack.c.b16 %v1702, %v1697
        %v1768 = vpack.c.b16 %v1703, %v1698
        %v1769 = vpack.c.b16 %v1704, %v1699
        %v1770 = vpack.c.b16 %v1705, %v1700
        %v1771 = vpack.c.b16 %v1711, %v1706
        %v1772 = vpack.c.b16 %v1712, %v1707
        %v1773 = vpack.c.b16 %v1713, %v1708
        %v1774 = vpack.c.b16 %v1714, %v1709
        %v1775 = vpack.c.b16 %v1715, %v1710
        %v1776 = vpack.c.b16 %v1721, %v1716
        %v1777 = vpack.c.b16 %v1722, %v1717
        %v1778 = vpack.c.b16 %v1723, %v1718
        %v1779 = vpack.c.b16 %v1724, %v1719
        %v1780 = vpack.c.b16 %v1725, %v1720
        %v1781 = vpack.c.b16 %v1731, %v1726
        %v1782 = vpack.c.b16 %v1732, %v1727
        %v1783 = vpack.c.b16 %v1733, %v1728
        %v1784 = vpack.c.b16 %v1734, %v1729
        %v1785 = vpack.c.b16 %v1735, %v1730
        %v1786 = vpack.c.b16 %v1741, %v1736
        %v1787 = vpack.c.b16 %v1742, %v1737
        %v1788 = vpack.c.b16 %v1743, %v1738
        %v1789 = vpack.c.b16 %v1744, %v1739
        %v1790 = vpack.c.b16 %v1745, %v1740
        %v1791 = vpack.c.b16 %v1751, %v1746
        %v1792 = vpack.c.b16 %v1752, %v1747
        %v1793 = vpack.c.b16 %v1753, %v1748
        %v1794 = vpack.c.b16 %v1754, %v1749
        %v1795 = vpack.c.b16 %v1755, %v1750
        %1836 = vmatprep.subr.bf16.mxu0 %v1757
        %1837 = vmatpush1.bf16.msra.mxu0 %v1756
        %1838 = vmatprep.subr.bf16.mxu0 %v1762
        %1839 = vmatpush1.bf16.msra.mxu0 %v1761
        %1840 = vmatprep.subr.bf16.mxu0 %v1767
        %1841 = vmatpush1.bf16.msra.mxu0 %v1766
        %1842 = vmatprep.subr.bf16.mxu0 %v1772
        %1843 = vmatpush1.bf16.msra.mxu0 %v1771
        %1844 = vmatprep.subr.bf16.mxu0 %v1777
        %1845 = vmatpush1.bf16.msra.mxu0 %v1776
        %1846 = vmatprep.subr.bf16.mxu0 %v1782
        %1847 = vmatpush1.bf16.msra.mxu0 %v1781
        %1848 = vmatprep.subr.bf16.mxu0 %v1787
        %1849 = vmatpush1.bf16.msra.mxu0 %v1786
        %1850 = vmatprep.subr.bf16.mxu0 %v1792
        %1851 = vmatpush1.bf16.msra.mxu0 %v1791
        %1852 = vmatprep.subr.bf16.mxu0 0
        %1853 = vmatpush1.bf16.msra.mxu0 0
        %1854 = vmatprep.subr.bf16.mxu0 0
        %1855 = vmatpush1.bf16.msra.mxu0 0
        %1856 = vmatprep.subr.bf16.mxu0 0
        %1857 = vmatpush1.bf16.msra.mxu0 0
        %1858 = vmatprep.subr.bf16.mxu0 0
        %1859 = vmatpush1.bf16.msra.mxu0 0
        %1860 = vmatprep.subr.bf16.mxu0 0
        %1861 = vmatpush1.bf16.msra.mxu0 0
        %1862 = vmatprep.subr.bf16.mxu0 0
        %1863 = vmatpush1.bf16.msra.mxu0 0
        %1864 = vmatprep.subr.bf16.mxu0 0
        %1865 = vmatpush1.bf16.msra.mxu0 0
        %1866 = vmatprep.subr.bf16.mxu0 0
        %1867 = vmatpush1.bf16.msra.mxu0 0
        %1868 = vmatprep.mubr.bf16.mxu0 0
        %1869 = vmatmul.mubr.bf16.gmra.mrb[0].mxu0 %v1147
        %v1870 = vpop.f32.mrb[0].mxu0
        %v1871 = vadd.f32 %v1606, %v1870
        %v1872 = vpop.f32.mrb[0].mxu0
        %v1873 = vadd.f32 %v1610, %v1872
        %v1874 = vpop.f32.mrb[0].mxu0
        %v1875 = vpop.f32.mrb[0].mxu0
        %1876 = vdwg.mxu0
        %1877 = vmatprep.subr.bf16.mxu0 %v1759
        %1878 = vmatpush1.bf16.msra.mxu0 %v1758
        %1879 = vmatprep.subr.bf16.mxu0 %v1764
        %1880 = vmatpush1.bf16.msra.mxu0 %v1763
        %1881 = vmatprep.subr.bf16.mxu0 %v1769
        %1882 = vmatpush1.bf16.msra.mxu0 %v1768
        %1883 = vmatprep.subr.bf16.mxu0 %v1774
        %1884 = vmatpush1.bf16.msra.mxu0 %v1773
        %1885 = vmatprep.subr.bf16.mxu0 %v1779
        %1886 = vmatpush1.bf16.msra.mxu0 %v1778
        %1887 = vmatprep.subr.bf16.mxu0 %v1784
        %1888 = vmatpush1.bf16.msra.mxu0 %v1783
        %1889 = vmatprep.subr.bf16.mxu0 %v1789
        %1890 = vmatpush1.bf16.msra.mxu0 %v1788
        %1891 = vmatprep.subr.bf16.mxu0 %v1794
        %1892 = vmatpush1.bf16.msra.mxu0 %v1793
        %1893 = vmatprep.subr.bf16.mxu0 0
        %1894 = vmatpush1.bf16.msra.mxu0 0
        %1895 = vmatprep.subr.bf16.mxu0 0
        %1896 = vmatpush1.bf16.msra.mxu0 0
        %1897 = vmatprep.subr.bf16.mxu0 0
        %1898 = vmatpush1.bf16.msra.mxu0 0
        %1899 = vmatprep.subr.bf16.mxu0 0
        %1900 = vmatpush1.bf16.msra.mxu0 0
        %1901 = vmatprep.subr.bf16.mxu0 0
        %1902 = vmatpush1.bf16.msra.mxu0 0
        %1903 = vmatprep.subr.bf16.mxu0 0
        %1904 = vmatpush1.bf16.msra.mxu0 0
        %1905 = vmatprep.subr.bf16.mxu0 0
        %1906 = vmatpush1.bf16.msra.mxu0 0
        %1907 = vmatprep.subr.bf16.mxu0 0
        %1908 = vmatpush1.bf16.msra.mxu0 0
        %1909 = vmatprep.mubr.bf16.mxu0 0
        %1910 = vmatmul.mubr.bf16.gmra.mrb[0].mxu0 %v1147
        %v1911 = vpop.f32.mrb[0].mxu0
        %v1912 = vadd.f32 %v1614, %v1911
        %v1913 = vpop.f32.mrb[0].mxu0
        %v1914 = vadd.f32 %v1618, %v1913
        %v1915 = vpop.f32.mrb[0].mxu0
        %v1916 = vpop.f32.mrb[0].mxu0
        %1917 = vdwg.mxu0
        %1918 = vmatprep.subr.bf16.mxu0 0
        %1919 = vmatpush1.bf16.msra.mxu0 %v1760
        %1920 = vmatprep.subr.bf16.mxu0 0
        %1921 = vmatpush1.bf16.msra.mxu0 %v1765
        %1922 = vmatprep.subr.bf16.mxu0 0
        %1923 = vmatpush1.bf16.msra.mxu0 %v1770
        %1924 = vmatprep.subr.bf16.mxu0 0
        %1925 = vmatpush1.bf16.msra.mxu0 %v1775
        %1926 = vmatprep.subr.bf16.mxu0 0
        %1927 = vmatpush1.bf16.msra.mxu0 %v1780
        %1928 = vmatprep.subr.bf16.mxu0 0
        %1929 = vmatpush1.bf16.msra.mxu0 %v1785
        %1930 = vmatprep.subr.bf16.mxu0 0
        %1931 = vmatpush1.bf16.msra.mxu0 %v1790
        %1932 = vmatprep.subr.bf16.mxu0 0
        %1933 = vmatpush1.bf16.msra.mxu0 %v1795
        %1934 = vmatprep.subr.bf16.mxu0 0
        %1935 = vmatpush1.bf16.msra.mxu0 0
        %1936 = vmatprep.subr.bf16.mxu0 0
        %1937 = vmatpush1.bf16.msra.mxu0 0
        %1938 = vmatprep.subr.bf16.mxu0 0
        %1939 = vmatpush1.bf16.msra.mxu0 0
        %1940 = vmatprep.subr.bf16.mxu0 0
        %1941 = vmatpush1.bf16.msra.mxu0 0
        %1942 = vmatprep.subr.bf16.mxu0 0
        %1943 = vmatpush1.bf16.msra.mxu0 0
        %1944 = vmatprep.subr.bf16.mxu0 0
        %1945 = vmatpush1.bf16.msra.mxu0 0
        %1946 = vmatprep.subr.bf16.mxu0 0
        %1947 = vmatpush1.bf16.msra.mxu0 0
        %1948 = vmatprep.subr.bf16.mxu0 0
        %1949 = vmatpush1.bf16.msra.mxu0 0
        %1950 = vmatprep.mubr.bf16.mxu0 0
        %1951 = vmatmul.mubr.bf16.gmra.mrb[0].mxu0 %v1147
        %v1952 = vpop.f32.mrb[0].mxu0
        %v1953 = vadd.f32 %v1622, %v1952
        %v1954 = vpop.f32.mrb[0].mxu0
        %v1955 = vpop.f32.mrb[0].mxu0
        %v1956 = vpop.f32.mrb[0].mxu0
        %1957 = vdwg.mxu0
        %v1958 = vxor.u32 %v1466, 2147483648
        %v1959 = vxor.u32 %v1468, 2147483648
        %v1960 = vxor.u32 %v1507, 2147483648
        %v1961 = vxor.u32 %v1509, 2147483648
        %v1962 = vxor.u32 %v1548, 2147483648
        %v1963 = vmul.f32 %v1958, 1.442695
        %v1964 = vpow.pop %v1963
        %v1965 = vmul.f32 %v1959, 1.442695
        %v1966 = vpow.pop %v1965
        %v1967 = vmul.f32 %v1960, 1.442695
        %v1968 = vpow.pop %v1967
        %v1969 = vmul.f32 %v1961, 1.442695
        %v1970 = vpow.pop %v1969
        %v1971 = vmul.f32 %v1962, 1.442695
        %v1972 = vpow.pop %v1971
        %v1973 = vadd.f32 %v1964, 1.0
        %v1974 = vadd.f32 %v1966, 1.0
        %v1975 = vadd.f32 %v1968, 1.0
        %v1976 = vadd.f32 %v1970, 1.0
        %v1977 = vadd.f32 %v1972, 1.0
        %v1978 = vrcp.pop %v1973
        %v1979 = vmul.f32 1.0, %v1978
        %v1980 = vrcp.pop %v1974
        %v1981 = vmul.f32 1.0, %v1980
        %v1982 = vrcp.pop %v1975
        %v1983 = vmul.f32 1.0, %v1982
        %v1984 = vrcp.pop %v1976
        %v1985 = vmul.f32 1.0, %v1984
        %v1986 = vrcp.pop %v1977
        %v1987 = vmul.f32 1.0, %v1986
        %v1988 = vmax.f32 %v1979, 1e-07
        %v1989 = vmax.f32 %v1981, 1e-07
        %v1990 = vmax.f32 %v1983, 1e-07
        %v1991 = vmax.f32 %v1985, 1e-07
        %v1992 = vmax.f32 %v1987, 1e-07
        %v1993 = vmin.f32 %v1988, 0.9999999
        %v1994 = vmin.f32 %v1989, 0.9999999
        %v1995 = vmin.f32 %v1990, 0.9999999
        %v1996 = vmin.f32 %v1991, 0.9999999
        %v1997 = vmin.f32 %v1992, 0.9999999
        %v1998 = vrot.slane %v1871, 4
        %v1999 = vmax.f32 %v1871, %v1998
        %v2000 = vrot.slane %v1999, 2
        %v2001 = vmax.f32 %v1999, %v2000
        %v2002 = vrot.slane %v2001, 1
        %v2003 = vmax.f32 %v2001, %v2002
        %v2004 = vrot.slane %v1873, 4
        %v2005 = vmax.f32 %v1873, %v2004
        %v2006 = vrot.slane %v2005, 2
        %v2007 = vmax.f32 %v2005, %v2006
        %v2008 = vrot.slane %v2007, 1
        %v2009 = vmax.f32 %v2007, %v2008
        %v2010 = vrot.slane %v1912, 4
        %v2011 = vmax.f32 %v1912, %v2010
        %v2012 = vrot.slane %v2011, 2
        %v2013 = vmax.f32 %v2011, %v2012
        %v2014 = vrot.slane %v2013, 1
        %v2015 = vmax.f32 %v2013, %v2014
        %v2016 = vrot.slane %v1914, 4
        %v2017 = vmax.f32 %v1914, %v2016
        %v2018 = vrot.slane %v2017, 2
        %v2019 = vmax.f32 %v2017, %v2018
        %v2020 = vrot.slane %v2019, 1
        %v2021 = vmax.f32 %v2019, %v2020
        %v2022 = vrot.slane %v1953, 4
        %v2023 = vmax.f32 %v1953, %v2022
        %v2024 = vrot.slane %v2023, 2
        %v2025 = vmax.f32 %v2023, %v2024
        %v2026 = vrot.slane %v2025, 1
        %v2027 = vmax.f32 %v2025, %v2026
        %v2028 = vsub.f32 %v1871, %v2003
        %v2029 = vsub.f32 %v1873, %v2009
        %v2030 = vsub.f32 %v1912, %v2015
        %v2031 = vsub.f32 %v1914, %v2021
        %v2032 = vsub.f32 %v1953, %v2027
        %v2033 = vmul.f32 %v2028, 1.442695
        %v2034 = vpow.pop %v2033
        %v2035 = vmul.f32 %v2029, 1.442695
        %v2036 = vpow.pop %v2035
        %v2037 = vmul.f32 %v2030, 1.442695
        %v2038 = vpow.pop %v2037
        %v2039 = vmul.f32 %v2031, 1.442695
        %v2040 = vpow.pop %v2039
        %v2041 = vmul.f32 %v2032, 1.442695
        %v2042 = vpow.pop %v2041
        %v2043 = vrot.slane %v2034, 4
        %v2044 = vadd.f32 %v2034, %v2043
        %v2045 = vrot.slane %v2044, 2
        %v2046 = vadd.f32 %v2044, %v2045
        %v2047 = vrot.slane %v2046, 1
        %v2048 = vadd.f32 %v2046, %v2047
        %v2049 = vrot.slane %v2036, 4
        %v2050 = vadd.f32 %v2036, %v2049
        %v2051 = vrot.slane %v2050, 2
        %v2052 = vadd.f32 %v2050, %v2051
        %v2053 = vrot.slane %v2052, 1
        %v2054 = vadd.f32 %v2052, %v2053
        %v2055 = vrot.slane %v2038, 4
        %v2056 = vadd.f32 %v2038, %v2055
        %v2057 = vrot.slane %v2056, 2
        %v2058 = vadd.f32 %v2056, %v2057
        %v2059 = vrot.slane %v2058, 1
        %v2060 = vadd.f32 %v2058, %v2059
        %v2061 = vrot.slane %v2040, 4
        %v2062 = vadd.f32 %v2040, %v2061
        %v2063 = vrot.slane %v2062, 2
        %v2064 = vadd.f32 %v2062, %v2063
        %v2065 = vrot.slane %v2064, 1
        %v2066 = vadd.f32 %v2064, %v2065
        %v2067 = vrot.slane %v2042, 4
        %v2068 = vadd.f32 %v2042, %v2067
        %v2069 = vrot.slane %v2068, 2
        %v2070 = vadd.f32 %v2068, %v2069
        %v2071 = vrot.slane %v2070, 1
        %v2072 = vadd.f32 %v2070, %v2071
        %v2073 = vmul.f32 %v1993, %v2034
        %v2074 = vmul.f32 %v1994, %v2036
        %v2075 = vmul.f32 %v1995, %v2038
        %v2076 = vmul.f32 %v1996, %v2040
        %v2077 = vmul.f32 %v1997, %v2042
        %v2078 = vrot.slane %v2073, 4
        %v2079 = vadd.f32 %v2073, %v2078
        %v2080 = vrot.slane %v2079, 2
        %v2081 = vadd.f32 %v2079, %v2080
        %v2082 = vrot.slane %v2081, 1
        %v2083 = vadd.f32 %v2081, %v2082
        %v2084 = vrot.slane %v2074, 4
        %v2085 = vadd.f32 %v2074, %v2084
        %v2086 = vrot.slane %v2085, 2
        %v2087 = vadd.f32 %v2085, %v2086
        %v2088 = vrot.slane %v2087, 1
        %v2089 = vadd.f32 %v2087, %v2088
        %v2090 = vrot.slane %v2075, 4
        %v2091 = vadd.f32 %v2075, %v2090
        %v2092 = vrot.slane %v2091, 2
        %v2093 = vadd.f32 %v2091, %v2092
        %v2094 = vrot.slane %v2093, 1
        %v2095 = vadd.f32 %v2093, %v2094
        %v2096 = vrot.slane %v2076, 4
        %v2097 = vadd.f32 %v2076, %v2096
        %v2098 = vrot.slane %v2097, 2
        %v2099 = vadd.f32 %v2097, %v2098
        %v2100 = vrot.slane %v2099, 1
        %v2101 = vadd.f32 %v2099, %v2100
        %v2102 = vrot.slane %v2077, 4
        %v2103 = vadd.f32 %v2077, %v2102
        %v2104 = vrot.slane %v2103, 2
        %v2105 = vadd.f32 %v2103, %v2104
        %v2106 = vrot.slane %v2105, 1
        %v2107 = vadd.f32 %v2105, %v2106
        %v2108 = vrcp.pop %v2048
        %v2109 = vrcp.pop %v2054
        %v2110 = vrcp.pop %v2060
        %v2111 = vrcp.pop %v2066
        %v2112 = vrcp.pop %v2072
        %v2113 = vmul.f32 %v2083, %v2108
        %v2114 = vmul.f32 %v2089, %v2109
        %v2115 = vmul.f32 %v2095, %v2110
        %v2116 = vmul.f32 %v2101, %v2111
        %v2117 = vmul.f32 %v2107, %v2112
        %v2123 = vcombine.low %v2113, %v2114
        %v2124 = vcombine.low %v2115, %v2116
        %v2126 = vunpack.c.l.s4 1966171168
        %v2127 = vunpack.c.0.s8 %v2126
        %v2128 = vlaneseq
        %v2129 = vshrl.u32 %v2128, 7
        %v2130 = vsub.s32 %v2127, %v2129
        %v2131 = vrot.slane %v2123, %v2130
        %v2133 = vunpack.c.l.s4 1966171168
        %v2134 = vunpack.c.0.s8 %v2133
        %v2135 = vlaneseq
        %v2136 = vshrl.u32 %v2135, 7
        %v2137 = vsub.s32 %v2134, %v2136
        %v2138 = vrot.slane %v2124, %v2137
        %v2140 = vunpack.c.l.s4 1966171168
        %v2141 = vunpack.c.0.s8 %v2140
        %v2142 = vlaneseq
        %v2143 = vshrl.u32 %v2142, 7
        %v2144 = vsub.s32 %v2141, %v2143
        %v2145 = vrot.slane %v2117, %v2144
        %v2146 = vcombine.low %v2131, %v2138
        %v2148 = vunpack.c.l.s4 1966171168
        %v2149 = vunpack.c.0.s8 %v2148
        %v2150 = vlaneseq
        %v2151 = vshrl.u32 %v2150, 7
        %v2152 = vsub.s32 %v2149, %v2151
        %v2153 = vrot.slane %v2146, %v2152
        %v2155 = vunpack.c.l.s4 1966171168
        %v2156 = vunpack.c.0.s8 %v2155
        %v2157 = vlaneseq
        %v2158 = vshrl.u32 %v2157, 7
        %v2159 = vsub.s32 %v2156, %v2158
        %v2160 = vrot.slane %v2145, %v2159
        %v2161 = vcombine.low %v2153, %v2160
        %v2163 = vlaneseq
        %vm2164 = vcmp.ge.s32.totalorder %v2163, 0
        %vm2165 = vcmp.lt.s32.totalorder %v2163, 640
        %vm2166 = vmand %vm2164, %vm2165
        %2167 = vst.msk [vmem:[%s636] sm:$0x1f] %vm2166, %v2161
        %p2168 = scmp.lt.s32.totalorder %s34, 1
        %s2169 = scalar_select %p2168, %s34, 1
        %s2170 = smul.addr %s2169, 5
        %s2171 = scalar_lea.vmem %s17, %s2170
        // Predicated region
        $region113: #{linear_model_forward.1} parent=87 // pred_check
          %p2172 = pneg %p414
        $region114: #{linear_model_forward.1} parent=87 // pred_check_branch
          %2174 = sbr.rel (%p2172) target = $region116
        $region115: #{linear_model_forward.1} parent=87 // pred_region
          _
        $region116: #{linear_model_forward.1} parent=87 // pred_fallthru
          _
      $region88: #{linear_model_forward.1} parent=5 // pred_fallthru
        _
      %p2175 = scmp.le.s32.totalorder 2, %s29
      // Predicated region
      $region117: #{linear_model_forward.1} parent=5 // pred_check
        %p2176 = pneg %p2175
      $region118: #{linear_model_forward.1} parent=5 // pred_check_branch
        %2178 = sbr.rel (%p2176) target = $region120
      $region119: #{linear_model_forward.1} parent=5 // pred_region
        %s2179 = ssub.s32 %s29, 2
        // Predicated region
        $region121: #{linear_model_forward.1} parent=119 // pred_check
          %p2180 = pneg %p420
        $region122: #{linear_model_forward.1} parent=119 // pred_check_branch
          %2182 = sbr.rel (%p2180) target = $region124
        $region123: #{linear_model_forward.1} parent=119 // pred_region
          %p2183 = scmp.lt.s32.totalorder %s35, 1
          %s2184 = scalar_select %p2183, %s35, 1
          %s2185 = smul.addr %s2184, 5
          %s2186 = scalar_lea.vmem %s17, %s2185
        $region124: #{linear_model_forward.1} parent=119 // pred_fallthru
          _
      $region120: #{linear_model_forward.1} parent=5 // pred_fallthru
        _
    $region6: #{linear_model_forward.1} parent=1 // loop_footer
      %s33 = sadd.s32 1, %s29
    $region7: #{linear_model_forward.1} parent=1 // loop_footer_branch
      %28 = sbr.rel target = $region3
    $region8: #{linear_model_forward.1} parent=1 // loop_exit
      _
    %2187 = vsyncpa [#allocation3], 1
    %s2188 = scalar_lea.sflag [#allocation3], 1
    %2189 = vsyncpa %s2188, 1
    %2190 = vsyncpa [#allocation5], 1
    %2191 = vsyncpa [#allocation8], 1
    %2192 = vsyncpa [#allocation11], 1

</llo_original>
